<compile_context>
chip_gen: v7x
topology: tpu7x:2x2x1
jax: 0.10.0
libtpu: 0.0.40
codegen_flags: <defaults>
</compile_context>

<pallas_src>
import jax
import jax.numpy as jnp
from jax.experimental import pallas as pl
from jax.experimental.pallas import tpu as pltpu


def _triplet_kernel(p1_ref, rf_ref, p2_ref, sel_ref, w_ref, b_ref, o_ref):
    """Block shapes:
      p1_ref, rf_ref, p2_ref : (TILE_B, K*D)  native dtype
      sel_ref                : (K, K*D)       f32 0/1 selection matrix
      w_ref                  : (8, K)         f32 (row 0 = Linear weight)
      b_ref                  : (1, 1)         f32 in SMEM (Linear bias)
      o_ref                  : (1, TILE_B)    f32 (lane-dense output)
    """
    f32 = jnp.float32
    eps = f32(1e-6)

    rf = rf_ref[...].astype(f32)
    d2 = rf - p2_ref[...].astype(f32) + eps            # (TB, K*D)
    d1 = rf - p1_ref[...].astype(f32) + eps            # (TB, K*D)

    sel = sel_ref[...]                                  # (K, K*D)
    dn = (((1,), (1,)), ((), ()))                       # contract last dims: A @ B.T

    # Grouped sum of squares over each length-D segment, on the MXU.
    s2 = jax.lax.dot_general(d2 * d2, sel, dn,
                             precision=jax.lax.Precision.HIGHEST,
                             preferred_element_type=f32)     # (TB, K)
    s1 = jax.lax.dot_general(d1 * d1, sel, dn,
                             precision=jax.lax.Precision.HIGHEST,
                             preferred_element_type=f32)     # (TB, K)

    # dist2 / dist1 == sqrt(s2 / s1): one divide + one sqrt (both EUP).
    y = jnp.sqrt(s2 / s1)
    y = 2.2 * (jax.nn.sigmoid(y + 0.2) - 0.55)               # (TB, K)

    # Linear(15 -> 1), lane-dense: (8, K) x (TB, K)^T -> (8, TB); row 0 is real.
    out8 = jax.lax.dot_general(w_ref[...], y, dn,
                               precision=jax.lax.Precision.HIGHEST,
                               preferred_element_type=f32)   # (8, TB)
    o_ref[...] = out8[0:1, :] + b_ref[0, 0]                  # (1, TB)


def _pick_tile_b(batch, kd, max_tile_b=None):
    """Largest batch tile whose 3 double-buffered input blocks stay ~<= 8 MiB.

    Keeps us inside the 16 MiB scoped-VMEM default on v5e and far from v7x's
    64 MiB physical VMEM.  Returns the full batch (single block) when it fits,
    otherwise a multiple of 128.
    """
    lane_kd = pl.cdiv(kd, 128) * 128                   # VMEM lane padding
    per_row = 3 * 2 * lane_kd * 4                      # 3 inputs x 2 buffers x f32
    budget = 8 * 1024 * 1024
    tb = (budget // per_row) // 128 * 128
    tb = max(128, min(tb, 2048))
    if max_tile_b is not None:
        tb = max(128, min(tb, max_tile_b // 128 * 128))
    if batch <= tb:
        return batch                                   # single full-batch block
    return tb                                          # multiple of 128


def cnn_triplet_ablation_forward(pen1fea, referfea, pen2fea, weight, bias,
                                 max_tile_b=None):
    """pen*fea: (B, K=15, D); weight: (1, 15); bias: (1,). Returns (B,) f32."""
    B, K, D = referfea.shape
    assert K == 15, "nn.Linear(15, 1) fixes the pair dimension to 15"
    KD = K * D

    # Contiguous reshapes are free; keep the feature dtype as-is (no HBM upcast).
    p1 = pen1fea.reshape(B, KD)
    rf = referfea.reshape(B, KD)
    p2 = pen2fea.reshape(B, KD)

    # 0/1 selector: sel[k, j] = 1 iff j // D == k  (grouped sum of squares).
    sel = (jnp.arange(K, dtype=jnp.int32)[:, None]
           == (jnp.arange(KD, dtype=jnp.int32)[None, :] // D)).astype(jnp.float32)

    # Pad the (1, 15) Linear weight to (8, 15) so the MXU contraction has a
    # full sublane tile; only row 0 is used.
    w8 = jnp.zeros((8, K), jnp.float32).at[0, :].set(
        weight.reshape(K).astype(jnp.float32))
    b2d = bias.reshape(1, 1).astype(jnp.float32)

    tile_b = _pick_tile_b(B, KD, max_tile_b)
    grid = (pl.cdiv(B, tile_b),)

    out = pl.pallas_call(
        _triplet_kernel,
        grid=grid,
        in_specs=[
            pl.BlockSpec((tile_b, KD), lambda i: (i, 0)),       # pen1
            pl.BlockSpec((tile_b, KD), lambda i: (i, 0)),       # refer
            pl.BlockSpec((tile_b, KD), lambda i: (i, 0)),       # pen2
            pl.BlockSpec((K, KD), lambda i: (0, 0)),            # selector (fetched once)
            pl.BlockSpec((8, K), lambda i: (0, 0)),             # weight   (fetched once)
            pl.BlockSpec(memory_space=pltpu.MemorySpace.SMEM),  # bias scalar
        ],
        out_specs=pl.BlockSpec((1, tile_b), lambda i: (0, i)),
        out_shape=jax.ShapeDtypeStruct((1, B), jnp.float32),
        compiler_params=pltpu.CompilerParams(
            dimension_semantics=("parallel",)),
    )(p1, rf, p2, sel, w8, b2d)

    return out[0]   # (B,) -- matches .squeeze(1) in the PyTorch forward


def _reference_jax(pen1fea, referfea, pen2fea, weight, bias):
    """Pure-JAX (full f32) reference of the PyTorch forward."""
    eps = jnp.float32(1e-6)
    d2 = jnp.sqrt(jnp.sum((referfea - pen2fea + eps) ** 2, axis=-1))
    d1 = jnp.sqrt(jnp.sum((referfea - pen1fea + eps) ** 2, axis=-1))
    y = d2 / d1
    y = 2.2 * (jax.nn.sigmoid(y + 0.2) - 0.55)
    return jnp.sum(y * weight.reshape(1, -1), axis=-1) + bias[0]


if __name__ == "__main__":
    key = jax.random.PRNGKey(0)
    k1, k2, k3, kw, kb = jax.random.split(key, 5)

    B, K, D = 4, 15, 16   # K=15 fixed by nn.Linear(15, 1)

    pen1fea = jax.random.normal(k1, (B, K, D), dtype=jnp.float32)
    referfea = jax.random.normal(k2, (B, K, D), dtype=jnp.float32)
    pen2fea = jax.random.normal(k3, (B, K, D), dtype=jnp.float32)

    # Deterministic nn.Linear(15, 1) init (PyTorch default: U(-1/sqrt(15), 1/sqrt(15)))
    bound = 1.0 / jnp.sqrt(jnp.float32(K))
    weight = jax.random.uniform(kw, (1, K), minval=-bound, maxval=bound,
                                dtype=jnp.float32)
    bias = jax.random.uniform(kb, (1,), minval=-bound, maxval=bound,
                              dtype=jnp.float32)

    # Main check: small batch, single full-extent block.
    out = cnn_triplet_ablation_forward(pen1fea, referfea, pen2fea, weight, bias)
    out = jax.block_until_ready(out)
    ref = _reference_jax(pen1fea, referfea, pen2fea, weight, bias)
    assert out.shape == (B,), out.shape
    assert jnp.allclose(out, ref, atol=1e-4, rtol=1e-4), (out, ref)

    # Secondary check: multi-tile pipelined path with a partial tail tile
    # (B=200, forced TILE_B=128 -> grid of 2, clipped output store on the tail).
    kk1, kk2, kk3 = jax.random.split(jax.random.PRNGKey(1), 3)
    B2 = 200
    p1b = jax.random.normal(kk1, (B2, K, D), dtype=jnp.float32)
    rfb = jax.random.normal(kk2, (B2, K, D), dtype=jnp.float32)
    p2b = jax.random.normal(kk3, (B2, K, D), dtype=jnp.float32)
    out2 = cnn_triplet_ablation_forward(p1b, rfb, p2b, weight, bias,
                                        max_tile_b=128)
    out2 = jax.block_until_ready(out2)
    ref2 = _reference_jax(p1b, rfb, p2b, weight, bias)
    assert out2.shape == (B2,), out2.shape
    assert jnp.allclose(out2, ref2, atol=1e-4, rtol=1e-4), (out2, ref2)

    print("KERNEL_OK")
</pallas_src>

<mosaic_0001>
module attributes {stable_mosaic.version = 11 : i64} {
  func.func @_triplet_kernel(%arg0: i32, %arg1: memref<4x240xf32, #tpu.memory_space<vmem>>, %arg2: memref<4x240xf32, #tpu.memory_space<vmem>>, %arg3: memref<4x240xf32, #tpu.memory_space<vmem>>, %arg4: memref<15x240xf32, #tpu.memory_space<vmem>>, %arg5: memref<8x15xf32, #tpu.memory_space<vmem>>, %arg6: memref<1x1xf32, #tpu.memory_space<smem>>, %arg7: memref<1x4xf32, #tpu.memory_space<vmem>>) attributes {dimension_semantics = [#tpu.dimension_semantics<parallel>], iteration_bounds = array<i64: 1>, scalar_prefetch = 0 : i64, scratch_operands = 0 : i64, tpu.core_type = #tpu.core_type<tc>, window_params = [{transform_indices = @transform_0, window_bounds = array<i64: 4, 240>}, {transform_indices = @transform_1, window_bounds = array<i64: 4, 240>}, {transform_indices = @transform_2, window_bounds = array<i64: 4, 240>}, {pipeline_mode = #tpu.pipeline_mode<synchronous>, transform_indices = @transform_3, window_bounds = array<i64: 15, 240>}, {pipeline_mode = #tpu.pipeline_mode<synchronous>, transform_indices = @transform_4, window_bounds = array<i64: 8, 15>}, {transform_indices = @transform_5, window_bounds = array<i64: 1, 1>}, {transform_indices = @transform_6, window_bounds = array<i64: 1, 4>}]} {
    %c0 = arith.constant 0 : index
    %c0_0 = arith.constant 0 : index
    %0 = vector.load %arg2[%c0, %c0_0] : memref<4x240xf32, #tpu.memory_space<vmem>>, vector<4x240xf32>
    %c0_1 = arith.constant 0 : index
    %c0_2 = arith.constant 0 : index
    %1 = vector.load %arg3[%c0_1, %c0_2] : memref<4x240xf32, #tpu.memory_space<vmem>>, vector<4x240xf32>
    %2 = arith.subf %0, %1 : vector<4x240xf32>
    %cst = arith.constant 9.99999997E-7 : f32
    %3 = vector.broadcast %cst : f32 to vector<4x240xf32>
    %4 = arith.addf %2, %3 : vector<4x240xf32>
    %c0_3 = arith.constant 0 : index
    %c0_4 = arith.constant 0 : index
    %5 = vector.load %arg1[%c0_3, %c0_4] : memref<4x240xf32, #tpu.memory_space<vmem>>, vector<4x240xf32>
    %6 = arith.subf %0, %5 : vector<4x240xf32>
    %cst_5 = arith.constant 9.99999997E-7 : f32
    %7 = vector.broadcast %cst_5 : f32 to vector<4x240xf32>
    %8 = arith.addf %6, %7 : vector<4x240xf32>
    %c0_6 = arith.constant 0 : index
    %c0_7 = arith.constant 0 : index
    %9 = vector.load %arg4[%c0_6, %c0_7] : memref<15x240xf32, #tpu.memory_space<vmem>>, vector<15x240xf32>
    %10 = arith.mulf %4, %4 : vector<4x240xf32>
    %cst_8 = arith.constant dense<0.000000e+00> : vector<4x15xf32>
    %11 = tpu.matmul %10, %9, %cst_8 {dimension_numbers = #tpu.dot_dimension_numbers<[1], [1], [0], [0], [0, 0, 1, 0], [], []>, precision = #tpu.contract_precision<fp32>} : vector<4x240xf32>, vector<15x240xf32>, vector<4x15xf32> -> vector<4x15xf32>
    %12 = arith.mulf %8, %8 : vector<4x240xf32>
    %cst_9 = arith.constant dense<0.000000e+00> : vector<4x15xf32>
    %13 = tpu.matmul %12, %9, %cst_9 {dimension_numbers = #tpu.dot_dimension_numbers<[1], [1], [0], [0], [0, 0, 1, 0], [], []>, precision = #tpu.contract_precision<fp32>} : vector<4x240xf32>, vector<15x240xf32>, vector<4x15xf32> -> vector<4x15xf32>
    %14 = arith.divf %11, %13 : vector<4x15xf32>
    %15 = math.sqrt %14 : vector<4x15xf32>
    %cst_10 = arith.constant 2.000000e-01 : f32
    %16 = vector.broadcast %cst_10 : f32 to vector<4x15xf32>
    %17 = arith.addf %15, %16 : vector<4x15xf32>
    %18 = arith.negf %17 : vector<4x15xf32>
    %19 = math.exp %18 : vector<4x15xf32>
    %cst_11 = arith.constant 1.000000e+00 : f32
    %20 = vector.broadcast %cst_11 : f32 to vector<4x15xf32>
    %21 = arith.addf %20, %19 : vector<4x15xf32>
    %22 = arith.divf %20, %21 : vector<4x15xf32>
    %cst_12 = arith.constant 5.500000e-01 : f32
    %23 = vector.broadcast %cst_12 : f32 to vector<4x15xf32>
    %24 = arith.subf %22, %23 : vector<4x15xf32>
    %cst_13 = arith.constant 2.200000e+00 : f32
    %25 = vector.broadcast %cst_13 : f32 to vector<4x15xf32>
    %26 = arith.mulf %25, %24 : vector<4x15xf32>
    %c0_14 = arith.constant 0 : index
    %c0_15 = arith.constant 0 : index
    %27 = vector.load %arg5[%c0_14, %c0_15] : memref<8x15xf32, #tpu.memory_space<vmem>>, vector<8x15xf32>
    %cst_16 = arith.constant dense<0.000000e+00> : vector<8x4xf32>
    %28 = tpu.matmul %27, %26, %cst_16 {dimension_numbers = #tpu.dot_dimension_numbers<[1], [1], [0], [0], [0, 0, 1, 0], [], []>, precision = #tpu.contract_precision<fp32>} : vector<8x15xf32>, vector<4x15xf32>, vector<8x4xf32> -> vector<8x4xf32>
    %29 = vector.extract_strided_slice %28 {offsets = [0, 0], sizes = [1, 4], strides = [1, 1]} : vector<8x4xf32> to vector<1x4xf32>
    %c0_17 = arith.constant 0 : index
    %c0_18 = arith.constant 0 : index
    %30 = memref.load %arg6[%c0_17, %c0_18] : memref<1x1xf32, #tpu.memory_space<smem>>
    %31 = vector.broadcast %30 : f32 to vector<1x4xf32>
    %32 = arith.addf %29, %31 : vector<1x4xf32>
    %c0_19 = arith.constant 0 : index
    %c0_20 = arith.constant 0 : index
    %33 = vector.load %arg7[%c0_19, %c0_20] : memref<1x4xf32, #tpu.memory_space<vmem>>, vector<1x4xf32>
    tpu.vector_store %arg7[%c0_19, %c0_20], %32 {strides = array<i32>} : memref<1x4xf32, #tpu.memory_space<vmem>>, vector<1x4xf32>,
    return
  }
  func.func @transform_0(%arg0: i32) -> (i32, i32) {
    %c0_i32 = arith.constant 0 : i32
    %c0_i32_0 = arith.constant 0 : i32
    return %arg0, %c0_i32 : i32, i32
  }
  func.func @transform_1(%arg0: i32) -> (i32, i32) {
    %c0_i32 = arith.constant 0 : i32
    %c0_i32_0 = arith.constant 0 : i32
    return %arg0, %c0_i32 : i32, i32
  }
  func.func @transform_2(%arg0: i32) -> (i32, i32) {
    %c0_i32 = arith.constant 0 : i32
    %c0_i32_0 = arith.constant 0 : i32
    return %arg0, %c0_i32 : i32, i32
  }
  func.func @transform_3(%arg0: i32) -> (i32, i32) {
    %c0_i32 = arith.constant 0 : i32
    %c0_i32_0 = arith.constant 0 : i32
    %c0_i32_1 = arith.constant 0 : i32
    return %c0_i32, %c0_i32_0 : i32, i32
  }
  func.func @transform_4(%arg0: i32) -> (i32, i32) {
    %c0_i32 = arith.constant 0 : i32
    %c0_i32_0 = arith.constant 0 : i32
    %c0_i32_1 = arith.constant 0 : i32
    return %c0_i32, %c0_i32_0 : i32, i32
  }
  func.func @transform_5(%arg0: i32) -> (i32, i32) {
    %c0_i32 = arith.constant 0 : i32
    %c0_i32_0 = arith.constant 0 : i32
    %c0_i32_1 = arith.constant 0 : i32
    return %c0_i32, %c0_i32_0 : i32, i32
  }
  func.func @transform_6(%arg0: i32) -> (i32, i32) {
    %c0_i32 = arith.constant 0 : i32
    %c0_i32_0 = arith.constant 0 : i32
    return %c0_i32, %arg0 : i32, i32
  }
}

</mosaic_0001>

<llo_original>
// kernel: tpu_custom_call.1
$region0: #{tpu_custom_call.1}
  #allocation0 [shape = 'u32[]', space=smem, size = 0x4, offset = 0x4, fixed_abs, tag = 'smem constant byte address 0x4 - core index']
  #allocation1 [shape = 'u32[144,128]{1,0:T(1,128)}', space=vmem, size = 0x12000, scoped, tag = 'internal scratch']
  #allocation2 [shape = 'f32[1,1]{1,0:T(1,128)S(6)}', space=smem, size = 0x200, scoped, tag = 'scoped memory for tpu_custom_call.1']
  %s0 = inlined_call_operand.hbm [shape: f32[4,240], index: 0, kind: input, shape index: {}]
  %s1 = inlined_call_operand.hbm [shape: f32[4,240], index: 1, kind: input, shape index: {}]
  %s2 = inlined_call_operand.vmem [shape: f32[4,240], index: 2, kind: input, shape index: {}]
  %s3 = inlined_call_operand.hbm [shape: f32[15,240], index: 3, kind: input, shape index: {}]
  %s4 = inlined_call_operand.vmem [shape: f32[8,15], index: 4, kind: input, shape index: {}]
  %s5 = inlined_call_operand.<no memory space> [shape: f32[1,1], index: 5, kind: input, shape index: {}]
  %s6 = inlined_call_operand.hbm [shape: f32[1,4], index: 6, kind: output, shape index: {}]
  %s7 = sld [smem:[#allocation0]]
  $region46: #{tpu_custom_call.1} parent=0
    _
  %s9 = ssub.s32 1, %s7
  %s10 = scalar_select 0, %s9, %s7
  %11 = sst [smem:[#allocation2]] %s5
  $region1: #{tpu_custom_call.1} parent=0
    #allocation3 [shape = 'u8[4096]{0}', space=vmem, size = 0x1000, scoped, tag = 'input window, operand 0, single buffered']
    #allocation4 [shape = 's32[1]{0}', space=sflag, size = 0x4, scoped, tag = 'scoped memory for tpu_custom_call.1']
    #allocation5 [shape = 's32[1]{0}', space=sflag, size = 0x4, scoped, tag = 'scoped memory for tpu_custom_call.1']
    #allocation6 [shape = 'u8[4096]{0}', space=vmem, size = 0x1000, scoped, tag = 'input window, operand 1, single buffered']
    #allocation7 [shape = 's32[1]{0}', space=sflag, size = 0x4, scoped, tag = 'scoped memory for tpu_custom_call.1']
    #allocation8 [shape = 'u8[16384]{0}', space=vmem, size = 0x4000, scoped, tag = 'input window, operand 3, single buffered']
    #allocation9 [shape = 'u8[512]{0}', space=vmem, size = 0x400, scoped, tag = 'output window, operand 0, single buffered']
    %12 = vsyncpa [#allocation4], 0
    %13 = vsyncpa [#allocation7], 0
    %14 = vsyncpa [#allocation5], 0
    // Predicated region
    $region2: #{tpu_custom_call.1} parent=1 // pred_check
      _
    $region3: #{tpu_custom_call.1} parent=1 // pred_check_branch
      %16 = sbr.rel (0) target = $region5
    $region4: #{tpu_custom_call.1} parent=1 // pred_region
      %s18 = ssub.s32 128, 128
      %19 = vsyncadd [#allocation4], %s18
      %s21 = sshll.u32 [#allocation3], 4
      %s22 = int_to_ptr.vmem [resolvable:$true] %s21
      %24 = dma.hbm_to_vmem [thread:$0]  %s0, 128, %s22, [#allocation4]
    $region5: #{tpu_custom_call.1} parent=1 // pred_fallthru
      _
    // Predicated region
    $region6: #{tpu_custom_call.1} parent=1 // pred_check
      _
    $region7: #{tpu_custom_call.1} parent=1 // pred_check_branch
      %26 = sbr.rel (0) target = $region9
    $region8: #{tpu_custom_call.1} parent=1 // pred_region
      %s28 = ssub.s32 128, 128
      %29 = vsyncadd [#allocation7], %s28
      %s31 = sshll.u32 [#allocation6], 4
      %s32 = int_to_ptr.vmem [resolvable:$true] %s31
      %34 = dma.hbm_to_vmem [thread:$0]  %s1, 128, %s32, [#allocation7]
    $region9: #{tpu_custom_call.1} parent=1 // pred_fallthru
      _
    // Predicated region
    $region10: #{tpu_custom_call.1} parent=1 // pred_check
      _
    $region11: #{tpu_custom_call.1} parent=1 // pred_check_branch
      %36 = sbr.rel (0) target = $region13
    $region12: #{tpu_custom_call.1} parent=1 // pred_region
      _
    $region13: #{tpu_custom_call.1} parent=1 // pred_fallthru
      _
    // Predicated region
    $region14: #{tpu_custom_call.1} parent=1 // pred_check
      _
    $region15: #{tpu_custom_call.1} parent=1 // pred_check_branch
      %38 = sbr.rel (0) target = $region17
    $region16: #{tpu_custom_call.1} parent=1 // pred_region
      %s40 = ssub.s32 512, 512
      %41 = vsyncadd [#allocation7], %s40
      %s42 = sshll.u32 [#allocation8], 4
      %s43 = int_to_ptr.vmem [resolvable:$true] %s42
      %48 = dma.hbm_to_vmem [thread:$0]  %s3, 512, %s43, [#allocation7], 256, 256, 16
    $region17: #{tpu_custom_call.1} parent=1 // pred_fallthru
      _
    // Predicated region
    $region18: #{tpu_custom_call.1} parent=1 // pred_check
      _
    $region19: #{tpu_custom_call.1} parent=1 // pred_check_branch
      %50 = sbr.rel (0) target = $region21
    $region20: #{tpu_custom_call.1} parent=1 // pred_region
      _
    $region21: #{tpu_custom_call.1} parent=1 // pred_fallthru
      _
    // Predicated region
    $region22: #{tpu_custom_call.1} parent=1 // pred_check
      _
    $region23: #{tpu_custom_call.1} parent=1 // pred_check_branch
      %52 = sbr.rel (0) target = $region25
    $region24: #{tpu_custom_call.1} parent=1 // pred_region
      _
    $region25: #{tpu_custom_call.1} parent=1 // pred_fallthru
      _
    // Predicated region
    $region26: #{tpu_custom_call.1} parent=1 // pred_check
      _
    $region27: #{tpu_custom_call.1} parent=1 // pred_check_branch
      %54 = sbr.rel (0) target = $region29
    $region28: #{tpu_custom_call.1} parent=1 // pred_region
      %55 = dma.done [#allocation4], 128
    $region29: #{tpu_custom_call.1} parent=1 // pred_fallthru
      _
    // Predicated region
    $region30: #{tpu_custom_call.1} parent=1 // pred_check
      _
    $region31: #{tpu_custom_call.1} parent=1 // pred_check_branch
      %57 = sbr.rel (0) target = $region33
    $region32: #{tpu_custom_call.1} parent=1 // pred_region
      %58 = dma.done [#allocation7], 128
    $region33: #{tpu_custom_call.1} parent=1 // pred_fallthru
      _
    // Predicated region
    $region34: #{tpu_custom_call.1} parent=1 // pred_check
      _
    $region35: #{tpu_custom_call.1} parent=1 // pred_check_branch
      %60 = sbr.rel (0) target = $region37
    $region36: #{tpu_custom_call.1} parent=1 // pred_region
      %61 = dma.done [#allocation7], 512
    $region37: #{tpu_custom_call.1} parent=1 // pred_fallthru
      _
    %v62 = vld [vmem:[#allocation6] sm:$0xff]
    %v63 = vld [vmem:[%s2] sm:$0xff]
    %v64 = vsub.f32 %v62, %v63
    %v65 = vadd.f32 %v64, 1e-06
    %v66 = vld [vmem:[#allocation3] sm:$0xff]
    %v67 = vsub.f32 %v62, %v66
    %v68 = vadd.f32 %v67, 1e-06
    %v69 = vld [vmem:[#allocation8] sm:$0xff]
    %v70 = vld [vmem:[#allocation8 + $0x8] sm:$0xff]
    %v71 = vld [vmem:[#allocation8 + $0x10] sm:$0x7f]
    %v72 = vld [vmem:[#allocation8 + $0x18] sm:$0x7f]
    %v73 = vmul.f32 %v65, %v65
    %v75 = vcombine.high %v73, %v73
    %vm76 = vcmask 916480
    %v77 = vsel %vm76, %v75, 0
    %v80 = vsel %vm76, %v70, 0
    %v83 = vsel %vm76, %v72, 0
    %v85 = vand.u32 %v80, 4294901760
    %86 = vmatprep.subr.mxu0 %v85
    %v87 = vand.u32 %v69, 4294901760
    %88 = vmatpush1.xpose.msra.mxu0 %v87
    %v89 = vand.u32 %v83, 4294901760
    %90 = vmatprep.subr.mxu0 %v89
    %v91 = vand.u32 %v71, 4294901760
    %92 = vmatpush1.xpose.msra.mxu0 %v91
    %93 = vmatprep.subr.mxu0 0.0
    %94 = vmatpush1.xpose.msra.mxu0 0.0
    %95 = vmatprep.subr.mxu0 0.0
    %96 = vmatpush1.xpose.msra.mxu0 0.0
    %97 = vmatprep.subr.mxu0 0.0
    %98 = vmatpush1.xpose.msra.mxu0 0.0
    %99 = vmatprep.subr.mxu0 0.0
    %100 = vmatpush1.xpose.msra.mxu0 0.0
    %101 = vmatprep.subr.mxu0 0.0
    %102 = vmatpush1.xpose.msra.mxu0 0.0
    %103 = vmatprep.subr.mxu0 0.0
    %104 = vmatpush1.xpose.msra.mxu0 0.0
    %105 = vmatprep.subr.mxu0 0.0
    %106 = vmatpush1.xpose.msra.mxu0 0.0
    %107 = vmatprep.subr.mxu0 0.0
    %108 = vmatpush1.xpose.msra.mxu0 0.0
    %109 = vmatprep.subr.mxu0 0.0
    %110 = vmatpush1.xpose.msra.mxu0 0.0
    %111 = vmatprep.subr.mxu0 0.0
    %112 = vmatpush1.xpose.msra.mxu0 0.0
    %113 = vmatprep.subr.mxu0 0.0
    %114 = vmatpush1.xpose.msra.mxu0 0.0
    %115 = vmatprep.subr.mxu0 0.0
    %116 = vmatpush1.xpose.msra.mxu0 0.0
    %117 = vmatprep.subr.mxu0 0.0
    %118 = vmatpush1.xpose.msra.mxu0 0.0
    %119 = vmatprep.subr.mxu0 0.0
    %120 = vmatpush1.xpose.msra.mxu0 0.0
    %121 = vmatprep.subr.mxu0 0.0
    %122 = vmatpush1.xpose.msra.mxu0 0.0
    %123 = vmatprep.subr.mxu0 0.0
    %124 = vmatpush1.xpose.msra.mxu0 0.0
    %125 = vmatprep.subr.mxu0 0.0
    %126 = vmatpush1.xpose.msra.mxu0 0.0
    %127 = vmatprep.subr.mxu0 0.0
    %128 = vmatpush1.xpose.msra.mxu0 0.0
    %129 = vmatprep.subr.mxu0 0.0
    %130 = vmatpush1.xpose.msra.mxu0 0.0
    %131 = vmatprep.subr.mxu0 0.0
    %132 = vmatpush1.xpose.msra.mxu0 0.0
    %133 = vmatprep.subr.mxu0 0.0
    %134 = vmatpush1.xpose.msra.mxu0 0.0
    %135 = vmatprep.subr.mxu0 0.0
    %136 = vmatpush1.xpose.msra.mxu0 0.0
    %137 = vmatprep.subr.mxu0 0.0
    %138 = vmatpush1.xpose.msra.mxu0 0.0
    %139 = vmatprep.subr.mxu0 0.0
    %140 = vmatpush1.xpose.msra.mxu0 0.0
    %141 = vmatprep.subr.mxu0 0.0
    %142 = vmatpush1.xpose.msra.mxu0 0.0
    %143 = vmatprep.subr.mxu0 0.0
    %144 = vmatpush1.xpose.msra.mxu0 0.0
    %145 = vmatprep.subr.mxu0 0.0
    %146 = vmatpush1.xpose.msra.mxu0 0.0
    %147 = vmatprep.subr.mxu0 0.0
    %148 = vmatpush1.xpose.msra.mxu0 0.0
    %149 = vmatprep.subr.mxu0 0.0
    %150 = vmatpush1.xpose.msra.mxu0 0.0
    %151 = vmatprep.subr.mxu0 0.0
    %152 = vmatpush1.xpose.msra.mxu0 0.0
    %v153 = vand.u32 %v77, 4294901760
    %v154 = vsub.f32 %v77, %v153
    %v155 = vand.u32 %v154, 4294901760
    %v156 = vsub.f32 %v154, %v155
    %v157 = vand.u32 %v156, 4294901760
    %158 = vmatprep.mubr.f32.mxu0 %v157
    %v159 = vand.u32 %v73, 4294901760
    %v160 = vsub.f32 %v73, %v159
    %v161 = vand.u32 %v160, 4294901760
    %v162 = vsub.f32 %v160, %v161
    %v163 = vand.u32 %v162, 4294901760
    %164 = vmatmul.mubr.f32.gmra.mrb[0].mxu0 %v163
    %v165 = vpop.f32.mrb[0].mxu0
    %v166 = vadd.f32 0.0, %v165
    %v167 = vpop.f32.mrb[0].mxu0
    %168 = vdwg.mxu0
    %v169 = vand.u32 %v80, 4294901760
    %v170 = vsub.f32 %v80, %v169
    %v171 = vand.u32 %v170, 4294901760
    %v172 = vsub.f32 %v170, %v171
    %v173 = vand.u32 %v172, 4294901760
    %174 = vmatprep.subr.mxu0 %v173
    %v175 = vand.u32 %v69, 4294901760
    %v176 = vsub.f32 %v69, %v175
    %v177 = vand.u32 %v176, 4294901760
    %v178 = vsub.f32 %v176, %v177
    %v179 = vand.u32 %v178, 4294901760
    %180 = vmatpush1.xpose.msra.mxu0 %v179
    %v181 = vand.u32 %v83, 4294901760
    %v182 = vsub.f32 %v83, %v181
    %v183 = vand.u32 %v182, 4294901760
    %v184 = vsub.f32 %v182, %v183
    %v185 = vand.u32 %v184, 4294901760
    %186 = vmatprep.subr.mxu0 %v185
    %v187 = vand.u32 %v71, 4294901760
    %v188 = vsub.f32 %v71, %v187
    %v189 = vand.u32 %v188, 4294901760
    %v190 = vsub.f32 %v188, %v189
    %v191 = vand.u32 %v190, 4294901760
    %192 = vmatpush1.xpose.msra.mxu0 %v191
    %193 = vmatprep.subr.mxu0 0.0
    %194 = vmatpush1.xpose.msra.mxu0 0.0
    %195 = vmatprep.subr.mxu0 0.0
    %196 = vmatpush1.xpose.msra.mxu0 0.0
    %197 = vmatprep.subr.mxu0 0.0
    %198 = vmatpush1.xpose.msra.mxu0 0.0
    %199 = vmatprep.subr.mxu0 0.0
    %200 = vmatpush1.xpose.msra.mxu0 0.0
    %201 = vmatprep.subr.mxu0 0.0
    %202 = vmatpush1.xpose.msra.mxu0 0.0
    %203 = vmatprep.subr.mxu0 0.0
    %204 = vmatpush1.xpose.msra.mxu0 0.0
    %205 = vmatprep.subr.mxu0 0.0
    %206 = vmatpush1.xpose.msra.mxu0 0.0
    %207 = vmatprep.subr.mxu0 0.0
    %208 = vmatpush1.xpose.msra.mxu0 0.0
    %209 = vmatprep.subr.mxu0 0.0
    %210 = vmatpush1.xpose.msra.mxu0 0.0
    %211 = vmatprep.subr.mxu0 0.0
    %212 = vmatpush1.xpose.msra.mxu0 0.0
    %213 = vmatprep.subr.mxu0 0.0
    %214 = vmatpush1.xpose.msra.mxu0 0.0
    %215 = vmatprep.subr.mxu0 0.0
    %216 = vmatpush1.xpose.msra.mxu0 0.0
    %217 = vmatprep.subr.mxu0 0.0
    %218 = vmatpush1.xpose.msra.mxu0 0.0
    %219 = vmatprep.subr.mxu0 0.0
    %220 = vmatpush1.xpose.msra.mxu0 0.0
    %221 = vmatprep.subr.mxu0 0.0
    %222 = vmatpush1.xpose.msra.mxu0 0.0
    %223 = vmatprep.subr.mxu0 0.0
    %224 = vmatpush1.xpose.msra.mxu0 0.0
    %225 = vmatprep.subr.mxu0 0.0
    %226 = vmatpush1.xpose.msra.mxu0 0.0
    %227 = vmatprep.subr.mxu0 0.0
    %228 = vmatpush1.xpose.msra.mxu0 0.0
    %229 = vmatprep.subr.mxu0 0.0
    %230 = vmatpush1.xpose.msra.mxu0 0.0
    %231 = vmatprep.subr.mxu0 0.0
    %232 = vmatpush1.xpose.msra.mxu0 0.0
    %233 = vmatprep.subr.mxu0 0.0
    %234 = vmatpush1.xpose.msra.mxu0 0.0
    %235 = vmatprep.subr.mxu0 0.0
    %236 = vmatpush1.xpose.msra.mxu0 0.0
    %237 = vmatprep.subr.mxu0 0.0
    %238 = vmatpush1.xpose.msra.mxu0 0.0
    %239 = vmatprep.subr.mxu0 0.0
    %240 = vmatpush1.xpose.msra.mxu0 0.0
    %241 = vmatprep.subr.mxu0 0.0
    %242 = vmatpush1.xpose.msra.mxu0 0.0
    %243 = vmatprep.subr.mxu0 0.0
    %244 = vmatpush1.xpose.msra.mxu0 0.0
    %245 = vmatprep.subr.mxu0 0.0
    %246 = vmatpush1.xpose.msra.mxu0 0.0
    %247 = vmatprep.subr.mxu0 0.0
    %248 = vmatpush1.xpose.msra.mxu0 0.0
    %249 = vmatprep.subr.mxu0 0.0
    %250 = vmatpush1.xpose.msra.mxu0 0.0
    %251 = vmatprep.subr.mxu0 0.0
    %252 = vmatpush1.xpose.msra.mxu0 0.0
    %v253 = vand.u32 %v77, 4294901760
    %254 = vmatprep.mubr.f32.mxu0 %v253
    %v255 = vand.u32 %v73, 4294901760
    %256 = vmatmul.mubr.f32.gmra.mrb[0].mxu0 %v255
    %v257 = vpop.f32.mrb[0].mxu0
    %v258 = vadd.f32 %v166, %v257
    %v259 = vpop.f32.mrb[0].mxu0
    %260 = vdwg.mxu0
    %v261 = vand.u32 %v80, 4294901760
    %v262 = vsub.f32 %v80, %v261
    %263 = vmatprep.subr.mxu0 %v262
    %v264 = vand.u32 %v69, 4294901760
    %v265 = vsub.f32 %v69, %v264
    %266 = vmatpush1.xpose.msra.mxu0 %v265
    %v267 = vand.u32 %v83, 4294901760
    %v268 = vsub.f32 %v83, %v267
    %269 = vmatprep.subr.mxu0 %v268
    %v270 = vand.u32 %v71, 4294901760
    %v271 = vsub.f32 %v71, %v270
    %272 = vmatpush1.xpose.msra.mxu0 %v271
    %273 = vmatprep.subr.mxu0 0.0
    %274 = vmatpush1.xpose.msra.mxu0 0.0
    %275 = vmatprep.subr.mxu0 0.0
    %276 = vmatpush1.xpose.msra.mxu0 0.0
    %277 = vmatprep.subr.mxu0 0.0
    %278 = vmatpush1.xpose.msra.mxu0 0.0
    %279 = vmatprep.subr.mxu0 0.0
    %280 = vmatpush1.xpose.msra.mxu0 0.0
    %281 = vmatprep.subr.mxu0 0.0
    %282 = vmatpush1.xpose.msra.mxu0 0.0
    %283 = vmatprep.subr.mxu0 0.0
    %284 = vmatpush1.xpose.msra.mxu0 0.0
    %285 = vmatprep.subr.mxu0 0.0
    %286 = vmatpush1.xpose.msra.mxu0 0.0
    %287 = vmatprep.subr.mxu0 0.0
    %288 = vmatpush1.xpose.msra.mxu0 0.0
    %289 = vmatprep.subr.mxu0 0.0
    %290 = vmatpush1.xpose.msra.mxu0 0.0
    %291 = vmatprep.subr.mxu0 0.0
    %292 = vmatpush1.xpose.msra.mxu0 0.0
    %293 = vmatprep.subr.mxu0 0.0
    %294 = vmatpush1.xpose.msra.mxu0 0.0
    %295 = vmatprep.subr.mxu0 0.0
    %296 = vmatpush1.xpose.msra.mxu0 0.0
    %297 = vmatprep.subr.mxu0 0.0
    %298 = vmatpush1.xpose.msra.mxu0 0.0
    %299 = vmatprep.subr.mxu0 0.0
    %300 = vmatpush1.xpose.msra.mxu0 0.0
    %301 = vmatprep.subr.mxu0 0.0
    %302 = vmatpush1.xpose.msra.mxu0 0.0
    %303 = vmatprep.subr.mxu0 0.0
    %304 = vmatpush1.xpose.msra.mxu0 0.0
    %305 = vmatprep.subr.mxu0 0.0
    %306 = vmatpush1.xpose.msra.mxu0 0.0
    %307 = vmatprep.subr.mxu0 0.0
    %308 = vmatpush1.xpose.msra.mxu0 0.0
    %309 = vmatprep.subr.mxu0 0.0
    %310 = vmatpush1.xpose.msra.mxu0 0.0
    %311 = vmatprep.subr.mxu0 0.0
    %312 = vmatpush1.xpose.msra.mxu0 0.0
    %313 = vmatprep.subr.mxu0 0.0
    %314 = vmatpush1.xpose.msra.mxu0 0.0
    %315 = vmatprep.subr.mxu0 0.0
    %316 = vmatpush1.xpose.msra.mxu0 0.0
    %317 = vmatprep.subr.mxu0 0.0
    %318 = vmatpush1.xpose.msra.mxu0 0.0
    %319 = vmatprep.subr.mxu0 0.0
    %320 = vmatpush1.xpose.msra.mxu0 0.0
    %321 = vmatprep.subr.mxu0 0.0
    %322 = vmatpush1.xpose.msra.mxu0 0.0
    %323 = vmatprep.subr.mxu0 0.0
    %324 = vmatpush1.xpose.msra.mxu0 0.0
    %325 = vmatprep.subr.mxu0 0.0
    %326 = vmatpush1.xpose.msra.mxu0 0.0
    %327 = vmatprep.subr.mxu0 0.0
    %328 = vmatpush1.xpose.msra.mxu0 0.0
    %329 = vmatprep.subr.mxu0 0.0
    %330 = vmatpush1.xpose.msra.mxu0 0.0
    %331 = vmatprep.subr.mxu0 0.0
    %332 = vmatpush1.xpose.msra.mxu0 0.0
    %v333 = vand.u32 %v77, 4294901760
    %v334 = vsub.f32 %v77, %v333
    %335 = vmatprep.mubr.f32.mxu0 %v334
    %v336 = vand.u32 %v73, 4294901760
    %v337 = vsub.f32 %v73, %v336
    %338 = vmatmul.mubr.f32.gmra.mrb[0].mxu0 %v337
    %v339 = vpop.f32.mrb[0].mxu0
    %v340 = vadd.f32 %v258, %v339
    %v341 = vpop.f32.mrb[0].mxu0
    %342 = vdwg.mxu0
    %v343 = vand.u32 %v80, 4294901760
    %344 = vmatprep.subr.mxu0 %v343
    %v345 = vand.u32 %v69, 4294901760
    %346 = vmatpush1.xpose.msra.mxu0 %v345
    %v347 = vand.u32 %v83, 4294901760
    %348 = vmatprep.subr.mxu0 %v347
    %v349 = vand.u32 %v71, 4294901760
    %350 = vmatpush1.xpose.msra.mxu0 %v349
    %351 = vmatprep.subr.mxu0 0.0
    %352 = vmatpush1.xpose.msra.mxu0 0.0
    %353 = vmatprep.subr.mxu0 0.0
    %354 = vmatpush1.xpose.msra.mxu0 0.0
    %355 = vmatprep.subr.mxu0 0.0
    %356 = vmatpush1.xpose.msra.mxu0 0.0
    %357 = vmatprep.subr.mxu0 0.0
    %358 = vmatpush1.xpose.msra.mxu0 0.0
    %359 = vmatprep.subr.mxu0 0.0
    %360 = vmatpush1.xpose.msra.mxu0 0.0
    %361 = vmatprep.subr.mxu0 0.0
    %362 = vmatpush1.xpose.msra.mxu0 0.0
    %363 = vmatprep.subr.mxu0 0.0
    %364 = vmatpush1.xpose.msra.mxu0 0.0
    %365 = vmatprep.subr.mxu0 0.0
    %366 = vmatpush1.xpose.msra.mxu0 0.0
    %367 = vmatprep.subr.mxu0 0.0
    %368 = vmatpush1.xpose.msra.mxu0 0.0
    %369 = vmatprep.subr.mxu0 0.0
    %370 = vmatpush1.xpose.msra.mxu0 0.0
    %371 = vmatprep.subr.mxu0 0.0
    %372 = vmatpush1.xpose.msra.mxu0 0.0
    %373 = vmatprep.subr.mxu0 0.0
    %374 = vmatpush1.xpose.msra.mxu0 0.0
    %375 = vmatprep.subr.mxu0 0.0
    %376 = vmatpush1.xpose.msra.mxu0 0.0
    %377 = vmatprep.subr.mxu0 0.0
    %378 = vmatpush1.xpose.msra.mxu0 0.0
    %379 = vmatprep.subr.mxu0 0.0
    %380 = vmatpush1.xpose.msra.mxu0 0.0
    %381 = vmatprep.subr.mxu0 0.0
    %382 = vmatpush1.xpose.msra.mxu0 0.0
    %383 = vmatprep.subr.mxu0 0.0
    %384 = vmatpush1.xpose.msra.mxu0 0.0
    %385 = vmatprep.subr.mxu0 0.0
    %386 = vmatpush1.xpose.msra.mxu0 0.0
    %387 = vmatprep.subr.mxu0 0.0
    %388 = vmatpush1.xpose.msra.mxu0 0.0
    %389 = vmatprep.subr.mxu0 0.0
    %390 = vmatpush1.xpose.msra.mxu0 0.0
    %391 = vmatprep.subr.mxu0 0.0
    %392 = vmatpush1.xpose.msra.mxu0 0.0
    %393 = vmatprep.subr.mxu0 0.0
    %394 = vmatpush1.xpose.msra.mxu0 0.0
    %395 = vmatprep.subr.mxu0 0.0
    %396 = vmatpush1.xpose.msra.mxu0 0.0
    %397 = vmatprep.subr.mxu0 0.0
    %398 = vmatpush1.xpose.msra.mxu0 0.0
    %399 = vmatprep.subr.mxu0 0.0
    %400 = vmatpush1.xpose.msra.mxu0 0.0
    %401 = vmatprep.subr.mxu0 0.0
    %402 = vmatpush1.xpose.msra.mxu0 0.0
    %403 = vmatprep.subr.mxu0 0.0
    %404 = vmatpush1.xpose.msra.mxu0 0.0
    %405 = vmatprep.subr.mxu0 0.0
    %406 = vmatpush1.xpose.msra.mxu0 0.0
    %407 = vmatprep.subr.mxu0 0.0
    %408 = vmatpush1.xpose.msra.mxu0 0.0
    %409 = vmatprep.subr.mxu0 0.0
    %410 = vmatpush1.xpose.msra.mxu0 0.0
    %v411 = vand.u32 %v77, 4294901760
    %v412 = vsub.f32 %v77, %v411
    %v413 = vand.u32 %v412, 4294901760
    %414 = vmatprep.mubr.f32.mxu0 %v413
    %v415 = vand.u32 %v73, 4294901760
    %v416 = vsub.f32 %v73, %v415
    %v417 = vand.u32 %v416, 4294901760
    %418 = vmatmul.mubr.f32.gmra.mrb[0].mxu0 %v417
    %v419 = vpop.f32.mrb[0].mxu0
    %v420 = vadd.f32 %v340, %v419
    %v421 = vpop.f32.mrb[0].mxu0
    %422 = vdwg.mxu0
    %v423 = vand.u32 %v80, 4294901760
    %v424 = vsub.f32 %v80, %v423
    %v425 = vand.u32 %v424, 4294901760
    %426 = vmatprep.subr.mxu0 %v425
    %v427 = vand.u32 %v69, 4294901760
    %v428 = vsub.f32 %v69, %v427
    %v429 = vand.u32 %v428, 4294901760
    %430 = vmatpush1.xpose.msra.mxu0 %v429
    %v431 = vand.u32 %v83, 4294901760
    %v432 = vsub.f32 %v83, %v431
    %v433 = vand.u32 %v432, 4294901760
    %434 = vmatprep.subr.mxu0 %v433
    %v435 = vand.u32 %v71, 4294901760
    %v436 = vsub.f32 %v71, %v435
    %v437 = vand.u32 %v436, 4294901760
    %438 = vmatpush1.xpose.msra.mxu0 %v437
    %439 = vmatprep.subr.mxu0 0.0
    %440 = vmatpush1.xpose.msra.mxu0 0.0
    %441 = vmatprep.subr.mxu0 0.0
    %442 = vmatpush1.xpose.msra.mxu0 0.0
    %443 = vmatprep.subr.mxu0 0.0
    %444 = vmatpush1.xpose.msra.mxu0 0.0
    %445 = vmatprep.subr.mxu0 0.0
    %446 = vmatpush1.xpose.msra.mxu0 0.0
    %447 = vmatprep.subr.mxu0 0.0
    %448 = vmatpush1.xpose.msra.mxu0 0.0
    %449 = vmatprep.subr.mxu0 0.0
    %450 = vmatpush1.xpose.msra.mxu0 0.0
    %451 = vmatprep.subr.mxu0 0.0
    %452 = vmatpush1.xpose.msra.mxu0 0.0
    %453 = vmatprep.subr.mxu0 0.0
    %454 = vmatpush1.xpose.msra.mxu0 0.0
    %455 = vmatprep.subr.mxu0 0.0
    %456 = vmatpush1.xpose.msra.mxu0 0.0
    %457 = vmatprep.subr.mxu0 0.0
    %458 = vmatpush1.xpose.msra.mxu0 0.0
    %459 = vmatprep.subr.mxu0 0.0
    %460 = vmatpush1.xpose.msra.mxu0 0.0
    %461 = vmatprep.subr.mxu0 0.0
    %462 = vmatpush1.xpose.msra.mxu0 0.0
    %463 = vmatprep.subr.mxu0 0.0
    %464 = vmatpush1.xpose.msra.mxu0 0.0
    %465 = vmatprep.subr.mxu0 0.0
    %466 = vmatpush1.xpose.msra.mxu0 0.0
    %467 = vmatprep.subr.mxu0 0.0
    %468 = vmatpush1.xpose.msra.mxu0 0.0
    %469 = vmatprep.subr.mxu0 0.0
    %470 = vmatpush1.xpose.msra.mxu0 0.0
    %471 = vmatprep.subr.mxu0 0.0
    %472 = vmatpush1.xpose.msra.mxu0 0.0
    %473 = vmatprep.subr.mxu0 0.0
    %474 = vmatpush1.xpose.msra.mxu0 0.0
    %475 = vmatprep.subr.mxu0 0.0
    %476 = vmatpush1.xpose.msra.mxu0 0.0
    %477 = vmatprep.subr.mxu0 0.0
    %478 = vmatpush1.xpose.msra.mxu0 0.0
    %479 = vmatprep.subr.mxu0 0.0
    %480 = vmatpush1.xpose.msra.mxu0 0.0
    %481 = vmatprep.subr.mxu0 0.0
    %482 = vmatpush1.xpose.msra.mxu0 0.0
    %483 = vmatprep.subr.mxu0 0.0
    %484 = vmatpush1.xpose.msra.mxu0 0.0
    %485 = vmatprep.subr.mxu0 0.0
    %486 = vmatpush1.xpose.msra.mxu0 0.0
    %487 = vmatprep.subr.mxu0 0.0
    %488 = vmatpush1.xpose.msra.mxu0 0.0
    %489 = vmatprep.subr.mxu0 0.0
    %490 = vmatpush1.xpose.msra.mxu0 0.0
    %491 = vmatprep.subr.mxu0 0.0
    %492 = vmatpush1.xpose.msra.mxu0 0.0
    %493 = vmatprep.subr.mxu0 0.0
    %494 = vmatpush1.xpose.msra.mxu0 0.0
    %495 = vmatprep.subr.mxu0 0.0
    %496 = vmatpush1.xpose.msra.mxu0 0.0
    %497 = vmatprep.subr.mxu0 0.0
    %498 = vmatpush1.xpose.msra.mxu0 0.0
    %v499 = vand.u32 %v77, 4294901760
    %500 = vmatprep.mubr.f32.mxu0 %v499
    %v501 = vand.u32 %v73, 4294901760
    %502 = vmatmul.mubr.f32.gmra.mrb[0].mxu0 %v501
    %v503 = vpop.f32.mrb[0].mxu0
    %v504 = vadd.f32 %v420, %v503
    %v505 = vpop.f32.mrb[0].mxu0
    %506 = vdwg.mxu0
    %v507 = vand.u32 %v80, 4294901760
    %508 = vmatprep.subr.mxu0 %v507
    %v509 = vand.u32 %v69, 4294901760
    %510 = vmatpush1.xpose.msra.mxu0 %v509
    %v511 = vand.u32 %v83, 4294901760
    %512 = vmatprep.subr.mxu0 %v511
    %v513 = vand.u32 %v71, 4294901760
    %514 = vmatpush1.xpose.msra.mxu0 %v513
    %515 = vmatprep.subr.mxu0 0.0
    %516 = vmatpush1.xpose.msra.mxu0 0.0
    %517 = vmatprep.subr.mxu0 0.0
    %518 = vmatpush1.xpose.msra.mxu0 0.0
    %519 = vmatprep.subr.mxu0 0.0
    %520 = vmatpush1.xpose.msra.mxu0 0.0
    %521 = vmatprep.subr.mxu0 0.0
    %522 = vmatpush1.xpose.msra.mxu0 0.0
    %523 = vmatprep.subr.mxu0 0.0
    %524 = vmatpush1.xpose.msra.mxu0 0.0
    %525 = vmatprep.subr.mxu0 0.0
    %526 = vmatpush1.xpose.msra.mxu0 0.0
    %527 = vmatprep.subr.mxu0 0.0
    %528 = vmatpush1.xpose.msra.mxu0 0.0
    %529 = vmatprep.subr.mxu0 0.0
    %530 = vmatpush1.xpose.msra.mxu0 0.0
    %531 = vmatprep.subr.mxu0 0.0
    %532 = vmatpush1.xpose.msra.mxu0 0.0
    %533 = vmatprep.subr.mxu0 0.0
    %534 = vmatpush1.xpose.msra.mxu0 0.0
    %535 = vmatprep.subr.mxu0 0.0
    %536 = vmatpush1.xpose.msra.mxu0 0.0
    %537 = vmatprep.subr.mxu0 0.0
    %538 = vmatpush1.xpose.msra.mxu0 0.0
    %539 = vmatprep.subr.mxu0 0.0
    %540 = vmatpush1.xpose.msra.mxu0 0.0
    %541 = vmatprep.subr.mxu0 0.0
    %542 = vmatpush1.xpose.msra.mxu0 0.0
    %543 = vmatprep.subr.mxu0 0.0
    %544 = vmatpush1.xpose.msra.mxu0 0.0
    %545 = vmatprep.subr.mxu0 0.0
    %546 = vmatpush1.xpose.msra.mxu0 0.0
    %547 = vmatprep.subr.mxu0 0.0
    %548 = vmatpush1.xpose.msra.mxu0 0.0
    %549 = vmatprep.subr.mxu0 0.0
    %550 = vmatpush1.xpose.msra.mxu0 0.0
    %551 = vmatprep.subr.mxu0 0.0
    %552 = vmatpush1.xpose.msra.mxu0 0.0
    %553 = vmatprep.subr.mxu0 0.0
    %554 = vmatpush1.xpose.msra.mxu0 0.0
    %555 = vmatprep.subr.mxu0 0.0
    %556 = vmatpush1.xpose.msra.mxu0 0.0
    %557 = vmatprep.subr.mxu0 0.0
    %558 = vmatpush1.xpose.msra.mxu0 0.0
    %559 = vmatprep.subr.mxu0 0.0
    %560 = vmatpush1.xpose.msra.mxu0 0.0
    %561 = vmatprep.subr.mxu0 0.0
    %562 = vmatpush1.xpose.msra.mxu0 0.0
    %563 = vmatprep.subr.mxu0 0.0
    %564 = vmatpush1.xpose.msra.mxu0 0.0
    %565 = vmatprep.subr.mxu0 0.0
    %566 = vmatpush1.xpose.msra.mxu0 0.0
    %567 = vmatprep.subr.mxu0 0.0
    %568 = vmatpush1.xpose.msra.mxu0 0.0
    %569 = vmatprep.subr.mxu0 0.0
    %570 = vmatpush1.xpose.msra.mxu0 0.0
    %571 = vmatprep.subr.mxu0 0.0
    %572 = vmatpush1.xpose.msra.mxu0 0.0
    %573 = vmatprep.subr.mxu0 0.0
    %574 = vmatpush1.xpose.msra.mxu0 0.0
    %v575 = vand.u32 %v77, 4294901760
    %576 = vmatprep.mubr.f32.mxu0 %v575
    %v577 = vand.u32 %v73, 4294901760
    %578 = vmatmul.mubr.f32.gmra.mrb[0].mxu0 %v577
    %v579 = vpop.f32.mrb[0].mxu0
    %v580 = vadd.f32 %v504, %v579
    %v581 = vpop.f32.mrb[0].mxu0
    %582 = vdwg.mxu0
    %v583 = vmul.f32 %v68, %v68
    %v585 = vcombine.high %v583, %v583
    %v586 = vsel %vm76, %v585, 0
    %v588 = vand.u32 %v80, 4294901760
    %589 = vmatprep.subr.mxu0 %v588
    %v590 = vand.u32 %v69, 4294901760
    %591 = vmatpush1.xpose.msra.mxu0 %v590
    %v592 = vand.u32 %v83, 4294901760
    %593 = vmatprep.subr.mxu0 %v592
    %v594 = vand.u32 %v71, 4294901760
    %595 = vmatpush1.xpose.msra.mxu0 %v594
    %596 = vmatprep.subr.mxu0 0.0
    %597 = vmatpush1.xpose.msra.mxu0 0.0
    %598 = vmatprep.subr.mxu0 0.0
    %599 = vmatpush1.xpose.msra.mxu0 0.0
    %600 = vmatprep.subr.mxu0 0.0
    %601 = vmatpush1.xpose.msra.mxu0 0.0
    %602 = vmatprep.subr.mxu0 0.0
    %603 = vmatpush1.xpose.msra.mxu0 0.0
    %604 = vmatprep.subr.mxu0 0.0
    %605 = vmatpush1.xpose.msra.mxu0 0.0
    %606 = vmatprep.subr.mxu0 0.0
    %607 = vmatpush1.xpose.msra.mxu0 0.0
    %608 = vmatprep.subr.mxu0 0.0
    %609 = vmatpush1.xpose.msra.mxu0 0.0
    %610 = vmatprep.subr.mxu0 0.0
    %611 = vmatpush1.xpose.msra.mxu0 0.0
    %612 = vmatprep.subr.mxu0 0.0
    %613 = vmatpush1.xpose.msra.mxu0 0.0
    %614 = vmatprep.subr.mxu0 0.0
    %615 = vmatpush1.xpose.msra.mxu0 0.0
    %616 = vmatprep.subr.mxu0 0.0
    %617 = vmatpush1.xpose.msra.mxu0 0.0
    %618 = vmatprep.subr.mxu0 0.0
    %619 = vmatpush1.xpose.msra.mxu0 0.0
    %620 = vmatprep.subr.mxu0 0.0
    %621 = vmatpush1.xpose.msra.mxu0 0.0
    %622 = vmatprep.subr.mxu0 0.0
    %623 = vmatpush1.xpose.msra.mxu0 0.0
    %624 = vmatprep.subr.mxu0 0.0
    %625 = vmatpush1.xpose.msra.mxu0 0.0
    %626 = vmatprep.subr.mxu0 0.0
    %627 = vmatpush1.xpose.msra.mxu0 0.0
    %628 = vmatprep.subr.mxu0 0.0
    %629 = vmatpush1.xpose.msra.mxu0 0.0
    %630 = vmatprep.subr.mxu0 0.0
    %631 = vmatpush1.xpose.msra.mxu0 0.0
    %632 = vmatprep.subr.mxu0 0.0
    %633 = vmatpush1.xpose.msra.mxu0 0.0
    %634 = vmatprep.subr.mxu0 0.0
    %635 = vmatpush1.xpose.msra.mxu0 0.0
    %636 = vmatprep.subr.mxu0 0.0
    %637 = vmatpush1.xpose.msra.mxu0 0.0
    %638 = vmatprep.subr.mxu0 0.0
    %639 = vmatpush1.xpose.msra.mxu0 0.0
    %640 = vmatprep.subr.mxu0 0.0
    %641 = vmatpush1.xpose.msra.mxu0 0.0
    %642 = vmatprep.subr.mxu0 0.0
    %643 = vmatpush1.xpose.msra.mxu0 0.0
    %644 = vmatprep.subr.mxu0 0.0
    %645 = vmatpush1.xpose.msra.mxu0 0.0
    %646 = vmatprep.subr.mxu0 0.0
    %647 = vmatpush1.xpose.msra.mxu0 0.0
    %648 = vmatprep.subr.mxu0 0.0
    %649 = vmatpush1.xpose.msra.mxu0 0.0
    %650 = vmatprep.subr.mxu0 0.0
    %651 = vmatpush1.xpose.msra.mxu0 0.0
    %652 = vmatprep.subr.mxu0 0.0
    %653 = vmatpush1.xpose.msra.mxu0 0.0
    %654 = vmatprep.subr.mxu0 0.0
    %655 = vmatpush1.xpose.msra.mxu0 0.0
    %v656 = vand.u32 %v586, 4294901760
    %v657 = vsub.f32 %v586, %v656
    %v658 = vand.u32 %v657, 4294901760
    %v659 = vsub.f32 %v657, %v658
    %v660 = vand.u32 %v659, 4294901760
    %661 = vmatprep.mubr.f32.mxu0 %v660
    %v662 = vand.u32 %v583, 4294901760
    %v663 = vsub.f32 %v583, %v662
    %v664 = vand.u32 %v663, 4294901760
    %v665 = vsub.f32 %v663, %v664
    %v666 = vand.u32 %v665, 4294901760
    %667 = vmatmul.mubr.f32.gmra.mrb[0].mxu0 %v666
    %v668 = vpop.f32.mrb[0].mxu0
    %v669 = vadd.f32 0.0, %v668
    %v670 = vpop.f32.mrb[0].mxu0
    %671 = vdwg.mxu0
    %v672 = vand.u32 %v80, 4294901760
    %v673 = vsub.f32 %v80, %v672
    %v674 = vand.u32 %v673, 4294901760
    %v675 = vsub.f32 %v673, %v674
    %v676 = vand.u32 %v675, 4294901760
    %677 = vmatprep.subr.mxu0 %v676
    %v678 = vand.u32 %v69, 4294901760
    %v679 = vsub.f32 %v69, %v678
    %v680 = vand.u32 %v679, 4294901760
    %v681 = vsub.f32 %v679, %v680
    %v682 = vand.u32 %v681, 4294901760
    %683 = vmatpush1.xpose.msra.mxu0 %v682
    %v684 = vand.u32 %v83, 4294901760
    %v685 = vsub.f32 %v83, %v684
    %v686 = vand.u32 %v685, 4294901760
    %v687 = vsub.f32 %v685, %v686
    %v688 = vand.u32 %v687, 4294901760
    %689 = vmatprep.subr.mxu0 %v688
    %v690 = vand.u32 %v71, 4294901760
    %v691 = vsub.f32 %v71, %v690
    %v692 = vand.u32 %v691, 4294901760
    %v693 = vsub.f32 %v691, %v692
    %v694 = vand.u32 %v693, 4294901760
    %695 = vmatpush1.xpose.msra.mxu0 %v694
    %696 = vmatprep.subr.mxu0 0.0
    %697 = vmatpush1.xpose.msra.mxu0 0.0
    %698 = vmatprep.subr.mxu0 0.0
    %699 = vmatpush1.xpose.msra.mxu0 0.0
    %700 = vmatprep.subr.mxu0 0.0
    %701 = vmatpush1.xpose.msra.mxu0 0.0
    %702 = vmatprep.subr.mxu0 0.0
    %703 = vmatpush1.xpose.msra.mxu0 0.0
    %704 = vmatprep.subr.mxu0 0.0
    %705 = vmatpush1.xpose.msra.mxu0 0.0
    %706 = vmatprep.subr.mxu0 0.0
    %707 = vmatpush1.xpose.msra.mxu0 0.0
    %708 = vmatprep.subr.mxu0 0.0
    %709 = vmatpush1.xpose.msra.mxu0 0.0
    %710 = vmatprep.subr.mxu0 0.0
    %711 = vmatpush1.xpose.msra.mxu0 0.0
    %712 = vmatprep.subr.mxu0 0.0
    %713 = vmatpush1.xpose.msra.mxu0 0.0
    %714 = vmatprep.subr.mxu0 0.0
    %715 = vmatpush1.xpose.msra.mxu0 0.0
    %716 = vmatprep.subr.mxu0 0.0
    %717 = vmatpush1.xpose.msra.mxu0 0.0
    %718 = vmatprep.subr.mxu0 0.0
    %719 = vmatpush1.xpose.msra.mxu0 0.0
    %720 = vmatprep.subr.mxu0 0.0
    %721 = vmatpush1.xpose.msra.mxu0 0.0
    %722 = vmatprep.subr.mxu0 0.0
    %723 = vmatpush1.xpose.msra.mxu0 0.0
    %724 = vmatprep.subr.mxu0 0.0
    %725 = vmatpush1.xpose.msra.mxu0 0.0
    %726 = vmatprep.subr.mxu0 0.0
    %727 = vmatpush1.xpose.msra.mxu0 0.0
    %728 = vmatprep.subr.mxu0 0.0
    %729 = vmatpush1.xpose.msra.mxu0 0.0
    %730 = vmatprep.subr.mxu0 0.0
    %731 = vmatpush1.xpose.msra.mxu0 0.0
    %732 = vmatprep.subr.mxu0 0.0
    %733 = vmatpush1.xpose.msra.mxu0 0.0
    %734 = vmatprep.subr.mxu0 0.0
    %735 = vmatpush1.xpose.msra.mxu0 0.0
    %736 = vmatprep.subr.mxu0 0.0
    %737 = vmatpush1.xpose.msra.mxu0 0.0
    %738 = vmatprep.subr.mxu0 0.0
    %739 = vmatpush1.xpose.msra.mxu0 0.0
    %740 = vmatprep.subr.mxu0 0.0
    %741 = vmatpush1.xpose.msra.mxu0 0.0
    %742 = vmatprep.subr.mxu0 0.0
    %743 = vmatpush1.xpose.msra.mxu0 0.0
    %744 = vmatprep.subr.mxu0 0.0
    %745 = vmatpush1.xpose.msra.mxu0 0.0
    %746 = vmatprep.subr.mxu0 0.0
    %747 = vmatpush1.xpose.msra.mxu0 0.0
    %748 = vmatprep.subr.mxu0 0.0
    %749 = vmatpush1.xpose.msra.mxu0 0.0
    %750 = vmatprep.subr.mxu0 0.0
    %751 = vmatpush1.xpose.msra.mxu0 0.0
    %752 = vmatprep.subr.mxu0 0.0
    %753 = vmatpush1.xpose.msra.mxu0 0.0
    %754 = vmatprep.subr.mxu0 0.0
    %755 = vmatpush1.xpose.msra.mxu0 0.0
    %v756 = vand.u32 %v586, 4294901760
    %757 = vmatprep.mubr.f32.mxu0 %v756
    %v758 = vand.u32 %v583, 4294901760
    %759 = vmatmul.mubr.f32.gmra.mrb[0].mxu0 %v758
    %v760 = vpop.f32.mrb[0].mxu0
    %v761 = vadd.f32 %v669, %v760
    %v762 = vpop.f32.mrb[0].mxu0
    %763 = vdwg.mxu0
    %v764 = vand.u32 %v80, 4294901760
    %v765 = vsub.f32 %v80, %v764
    %766 = vmatprep.subr.mxu0 %v765
    %v767 = vand.u32 %v69, 4294901760
    %v768 = vsub.f32 %v69, %v767
    %769 = vmatpush1.xpose.msra.mxu0 %v768
    %v770 = vand.u32 %v83, 4294901760
    %v771 = vsub.f32 %v83, %v770
    %772 = vmatprep.subr.mxu0 %v771
    %v773 = vand.u32 %v71, 4294901760
    %v774 = vsub.f32 %v71, %v773
    %775 = vmatpush1.xpose.msra.mxu0 %v774
    %776 = vmatprep.subr.mxu0 0.0
    %777 = vmatpush1.xpose.msra.mxu0 0.0
    %778 = vmatprep.subr.mxu0 0.0
    %779 = vmatpush1.xpose.msra.mxu0 0.0
    %780 = vmatprep.subr.mxu0 0.0
    %781 = vmatpush1.xpose.msra.mxu0 0.0
    %782 = vmatprep.subr.mxu0 0.0
    %783 = vmatpush1.xpose.msra.mxu0 0.0
    %784 = vmatprep.subr.mxu0 0.0
    %785 = vmatpush1.xpose.msra.mxu0 0.0
    %786 = vmatprep.subr.mxu0 0.0
    %787 = vmatpush1.xpose.msra.mxu0 0.0
    %788 = vmatprep.subr.mxu0 0.0
    %789 = vmatpush1.xpose.msra.mxu0 0.0
    %790 = vmatprep.subr.mxu0 0.0
    %791 = vmatpush1.xpose.msra.mxu0 0.0
    %792 = vmatprep.subr.mxu0 0.0
    %793 = vmatpush1.xpose.msra.mxu0 0.0
    %794 = vmatprep.subr.mxu0 0.0
    %795 = vmatpush1.xpose.msra.mxu0 0.0
    %796 = vmatprep.subr.mxu0 0.0
    %797 = vmatpush1.xpose.msra.mxu0 0.0
    %798 = vmatprep.subr.mxu0 0.0
    %799 = vmatpush1.xpose.msra.mxu0 0.0
    %800 = vmatprep.subr.mxu0 0.0
    %801 = vmatpush1.xpose.msra.mxu0 0.0
    %802 = vmatprep.subr.mxu0 0.0
    %803 = vmatpush1.xpose.msra.mxu0 0.0
    %804 = vmatprep.subr.mxu0 0.0
    %805 = vmatpush1.xpose.msra.mxu0 0.0
    %806 = vmatprep.subr.mxu0 0.0
    %807 = vmatpush1.xpose.msra.mxu0 0.0
    %808 = vmatprep.subr.mxu0 0.0
    %809 = vmatpush1.xpose.msra.mxu0 0.0
    %810 = vmatprep.subr.mxu0 0.0
    %811 = vmatpush1.xpose.msra.mxu0 0.0
    %812 = vmatprep.subr.mxu0 0.0
    %813 = vmatpush1.xpose.msra.mxu0 0.0
    %814 = vmatprep.subr.mxu0 0.0
    %815 = vmatpush1.xpose.msra.mxu0 0.0
    %816 = vmatprep.subr.mxu0 0.0
    %817 = vmatpush1.xpose.msra.mxu0 0.0
    %818 = vmatprep.subr.mxu0 0.0
    %819 = vmatpush1.xpose.msra.mxu0 0.0
    %820 = vmatprep.subr.mxu0 0.0
    %821 = vmatpush1.xpose.msra.mxu0 0.0
    %822 = vmatprep.subr.mxu0 0.0
    %823 = vmatpush1.xpose.msra.mxu0 0.0
    %824 = vmatprep.subr.mxu0 0.0
    %825 = vmatpush1.xpose.msra.mxu0 0.0
    %826 = vmatprep.subr.mxu0 0.0
    %827 = vmatpush1.xpose.msra.mxu0 0.0
    %828 = vmatprep.subr.mxu0 0.0
    %829 = vmatpush1.xpose.msra.mxu0 0.0
    %830 = vmatprep.subr.mxu0 0.0
    %831 = vmatpush1.xpose.msra.mxu0 0.0
    %832 = vmatprep.subr.mxu0 0.0
    %833 = vmatpush1.xpose.msra.mxu0 0.0
    %834 = vmatprep.subr.mxu0 0.0
    %835 = vmatpush1.xpose.msra.mxu0 0.0
    %v836 = vand.u32 %v586, 4294901760
    %v837 = vsub.f32 %v586, %v836
    %838 = vmatprep.mubr.f32.mxu0 %v837
    %v839 = vand.u32 %v583, 4294901760
    %v840 = vsub.f32 %v583, %v839
    %841 = vmatmul.mubr.f32.gmra.mrb[0].mxu0 %v840
    %v842 = vpop.f32.mrb[0].mxu0
    %v843 = vadd.f32 %v761, %v842
    %v844 = vpop.f32.mrb[0].mxu0
    %845 = vdwg.mxu0
    %v846 = vand.u32 %v80, 4294901760
    %847 = vmatprep.subr.mxu0 %v846
    %v848 = vand.u32 %v69, 4294901760
    %849 = vmatpush1.xpose.msra.mxu0 %v848
    %v850 = vand.u32 %v83, 4294901760
    %851 = vmatprep.subr.mxu0 %v850
    %v852 = vand.u32 %v71, 4294901760
    %853 = vmatpush1.xpose.msra.mxu0 %v852
    %854 = vmatprep.subr.mxu0 0.0
    %855 = vmatpush1.xpose.msra.mxu0 0.0
    %856 = vmatprep.subr.mxu0 0.0
    %857 = vmatpush1.xpose.msra.mxu0 0.0
    %858 = vmatprep.subr.mxu0 0.0
    %859 = vmatpush1.xpose.msra.mxu0 0.0
    %860 = vmatprep.subr.mxu0 0.0
    %861 = vmatpush1.xpose.msra.mxu0 0.0
    %862 = vmatprep.subr.mxu0 0.0
    %863 = vmatpush1.xpose.msra.mxu0 0.0
    %864 = vmatprep.subr.mxu0 0.0
    %865 = vmatpush1.xpose.msra.mxu0 0.0
    %866 = vmatprep.subr.mxu0 0.0
    %867 = vmatpush1.xpose.msra.mxu0 0.0
    %868 = vmatprep.subr.mxu0 0.0
    %869 = vmatpush1.xpose.msra.mxu0 0.0
    %870 = vmatprep.subr.mxu0 0.0
    %871 = vmatpush1.xpose.msra.mxu0 0.0
    %872 = vmatprep.subr.mxu0 0.0
    %873 = vmatpush1.xpose.msra.mxu0 0.0
    %874 = vmatprep.subr.mxu0 0.0
    %875 = vmatpush1.xpose.msra.mxu0 0.0
    %876 = vmatprep.subr.mxu0 0.0
    %877 = vmatpush1.xpose.msra.mxu0 0.0
    %878 = vmatprep.subr.mxu0 0.0
    %879 = vmatpush1.xpose.msra.mxu0 0.0
    %880 = vmatprep.subr.mxu0 0.0
    %881 = vmatpush1.xpose.msra.mxu0 0.0
    %882 = vmatprep.subr.mxu0 0.0
    %883 = vmatpush1.xpose.msra.mxu0 0.0
    %884 = vmatprep.subr.mxu0 0.0
    %885 = vmatpush1.xpose.msra.mxu0 0.0
    %886 = vmatprep.subr.mxu0 0.0
    %887 = vmatpush1.xpose.msra.mxu0 0.0
    %888 = vmatprep.subr.mxu0 0.0
    %889 = vmatpush1.xpose.msra.mxu0 0.0
    %890 = vmatprep.subr.mxu0 0.0
    %891 = vmatpush1.xpose.msra.mxu0 0.0
    %892 = vmatprep.subr.mxu0 0.0
    %893 = vmatpush1.xpose.msra.mxu0 0.0
    %894 = vmatprep.subr.mxu0 0.0
    %895 = vmatpush1.xpose.msra.mxu0 0.0
    %896 = vmatprep.subr.mxu0 0.0
    %897 = vmatpush1.xpose.msra.mxu0 0.0
    %898 = vmatprep.subr.mxu0 0.0
    %899 = vmatpush1.xpose.msra.mxu0 0.0
    %900 = vmatprep.subr.mxu0 0.0
    %901 = vmatpush1.xpose.msra.mxu0 0.0
    %902 = vmatprep.subr.mxu0 0.0
    %903 = vmatpush1.xpose.msra.mxu0 0.0
    %904 = vmatprep.subr.mxu0 0.0
    %905 = vmatpush1.xpose.msra.mxu0 0.0
    %906 = vmatprep.subr.mxu0 0.0
    %907 = vmatpush1.xpose.msra.mxu0 0.0
    %908 = vmatprep.subr.mxu0 0.0
    %909 = vmatpush1.xpose.msra.mxu0 0.0
    %910 = vmatprep.subr.mxu0 0.0
    %911 = vmatpush1.xpose.msra.mxu0 0.0
    %912 = vmatprep.subr.mxu0 0.0
    %913 = vmatpush1.xpose.msra.mxu0 0.0
    %v914 = vand.u32 %v586, 4294901760
    %v915 = vsub.f32 %v586, %v914
    %v916 = vand.u32 %v915, 4294901760
    %917 = vmatprep.mubr.f32.mxu0 %v916
    %v918 = vand.u32 %v583, 4294901760
    %v919 = vsub.f32 %v583, %v918
    %v920 = vand.u32 %v919, 4294901760
    %921 = vmatmul.mubr.f32.gmra.mrb[0].mxu0 %v920
    %v922 = vpop.f32.mrb[0].mxu0
    %v923 = vadd.f32 %v843, %v922
    %v924 = vpop.f32.mrb[0].mxu0
    %925 = vdwg.mxu0
    %v926 = vand.u32 %v80, 4294901760
    %v927 = vsub.f32 %v80, %v926
    %v928 = vand.u32 %v927, 4294901760
    %929 = vmatprep.subr.mxu0 %v928
    %v930 = vand.u32 %v69, 4294901760
    %v931 = vsub.f32 %v69, %v930
    %v932 = vand.u32 %v931, 4294901760
    %933 = vmatpush1.xpose.msra.mxu0 %v932
    %v934 = vand.u32 %v83, 4294901760
    %v935 = vsub.f32 %v83, %v934
    %v936 = vand.u32 %v935, 4294901760
    %937 = vmatprep.subr.mxu0 %v936
    %v938 = vand.u32 %v71, 4294901760
    %v939 = vsub.f32 %v71, %v938
    %v940 = vand.u32 %v939, 4294901760
    %941 = vmatpush1.xpose.msra.mxu0 %v940
    %942 = vmatprep.subr.mxu0 0.0
    %943 = vmatpush1.xpose.msra.mxu0 0.0
    %944 = vmatprep.subr.mxu0 0.0
    %945 = vmatpush1.xpose.msra.mxu0 0.0
    %946 = vmatprep.subr.mxu0 0.0
    %947 = vmatpush1.xpose.msra.mxu0 0.0
    %948 = vmatprep.subr.mxu0 0.0
    %949 = vmatpush1.xpose.msra.mxu0 0.0
    %950 = vmatprep.subr.mxu0 0.0
    %951 = vmatpush1.xpose.msra.mxu0 0.0
    %952 = vmatprep.subr.mxu0 0.0
    %953 = vmatpush1.xpose.msra.mxu0 0.0
    %954 = vmatprep.subr.mxu0 0.0
    %955 = vmatpush1.xpose.msra.mxu0 0.0
    %956 = vmatprep.subr.mxu0 0.0
    %957 = vmatpush1.xpose.msra.mxu0 0.0
    %958 = vmatprep.subr.mxu0 0.0
    %959 = vmatpush1.xpose.msra.mxu0 0.0
    %960 = vmatprep.subr.mxu0 0.0
    %961 = vmatpush1.xpose.msra.mxu0 0.0
    %962 = vmatprep.subr.mxu0 0.0
    %963 = vmatpush1.xpose.msra.mxu0 0.0
    %964 = vmatprep.subr.mxu0 0.0
    %965 = vmatpush1.xpose.msra.mxu0 0.0
    %966 = vmatprep.subr.mxu0 0.0
    %967 = vmatpush1.xpose.msra.mxu0 0.0
    %968 = vmatprep.subr.mxu0 0.0
    %969 = vmatpush1.xpose.msra.mxu0 0.0
    %970 = vmatprep.subr.mxu0 0.0
    %971 = vmatpush1.xpose.msra.mxu0 0.0
    %972 = vmatprep.subr.mxu0 0.0
    %973 = vmatpush1.xpose.msra.mxu0 0.0
    %974 = vmatprep.subr.mxu0 0.0
    %975 = vmatpush1.xpose.msra.mxu0 0.0
    %976 = vmatprep.subr.mxu0 0.0
    %977 = vmatpush1.xpose.msra.mxu0 0.0
    %978 = vmatprep.subr.mxu0 0.0
    %979 = vmatpush1.xpose.msra.mxu0 0.0
    %980 = vmatprep.subr.mxu0 0.0
    %981 = vmatpush1.xpose.msra.mxu0 0.0
    %982 = vmatprep.subr.mxu0 0.0
    %983 = vmatpush1.xpose.msra.mxu0 0.0
    %984 = vmatprep.subr.mxu0 0.0
    %985 = vmatpush1.xpose.msra.mxu0 0.0
    %986 = vmatprep.subr.mxu0 0.0
    %987 = vmatpush1.xpose.msra.mxu0 0.0
    %988 = vmatprep.subr.mxu0 0.0
    %989 = vmatpush1.xpose.msra.mxu0 0.0
    %990 = vmatprep.subr.mxu0 0.0
    %991 = vmatpush1.xpose.msra.mxu0 0.0
    %992 = vmatprep.subr.mxu0 0.0
    %993 = vmatpush1.xpose.msra.mxu0 0.0
    %994 = vmatprep.subr.mxu0 0.0
    %995 = vmatpush1.xpose.msra.mxu0 0.0
    %996 = vmatprep.subr.mxu0 0.0
    %997 = vmatpush1.xpose.msra.mxu0 0.0
    %998 = vmatprep.subr.mxu0 0.0
    %999 = vmatpush1.xpose.msra.mxu0 0.0
    %1000 = vmatprep.subr.mxu0 0.0
    %1001 = vmatpush1.xpose.msra.mxu0 0.0
    %v1002 = vand.u32 %v586, 4294901760
    %1003 = vmatprep.mubr.f32.mxu0 %v1002
    %v1004 = vand.u32 %v583, 4294901760
    %1005 = vmatmul.mubr.f32.gmra.mrb[0].mxu0 %v1004
    %v1006 = vpop.f32.mrb[0].mxu0
    %v1007 = vadd.f32 %v923, %v1006
    %v1008 = vpop.f32.mrb[0].mxu0
    %1009 = vdwg.mxu0
    %v1010 = vand.u32 %v80, 4294901760
    %1011 = vmatprep.subr.mxu0 %v1010
    %v1012 = vand.u32 %v69, 4294901760
    %1013 = vmatpush1.xpose.msra.mxu0 %v1012
    %v1014 = vand.u32 %v83, 4294901760
    %1015 = vmatprep.subr.mxu0 %v1014
    %v1016 = vand.u32 %v71, 4294901760
    %1017 = vmatpush1.xpose.msra.mxu0 %v1016
    %1018 = vmatprep.subr.mxu0 0.0
    %1019 = vmatpush1.xpose.msra.mxu0 0.0
    %1020 = vmatprep.subr.mxu0 0.0
    %1021 = vmatpush1.xpose.msra.mxu0 0.0
    %1022 = vmatprep.subr.mxu0 0.0
    %1023 = vmatpush1.xpose.msra.mxu0 0.0
    %1024 = vmatprep.subr.mxu0 0.0
    %1025 = vmatpush1.xpose.msra.mxu0 0.0
    %1026 = vmatprep.subr.mxu0 0.0
    %1027 = vmatpush1.xpose.msra.mxu0 0.0
    %1028 = vmatprep.subr.mxu0 0.0
    %1029 = vmatpush1.xpose.msra.mxu0 0.0
    %1030 = vmatprep.subr.mxu0 0.0
    %1031 = vmatpush1.xpose.msra.mxu0 0.0
    %1032 = vmatprep.subr.mxu0 0.0
    %1033 = vmatpush1.xpose.msra.mxu0 0.0
    %1034 = vmatprep.subr.mxu0 0.0
    %1035 = vmatpush1.xpose.msra.mxu0 0.0
    %1036 = vmatprep.subr.mxu0 0.0
    %1037 = vmatpush1.xpose.msra.mxu0 0.0
    %1038 = vmatprep.subr.mxu0 0.0
    %1039 = vmatpush1.xpose.msra.mxu0 0.0
    %1040 = vmatprep.subr.mxu0 0.0
    %1041 = vmatpush1.xpose.msra.mxu0 0.0
    %1042 = vmatprep.subr.mxu0 0.0
    %1043 = vmatpush1.xpose.msra.mxu0 0.0
    %1044 = vmatprep.subr.mxu0 0.0
    %1045 = vmatpush1.xpose.msra.mxu0 0.0
    %1046 = vmatprep.subr.mxu0 0.0
    %1047 = vmatpush1.xpose.msra.mxu0 0.0
    %1048 = vmatprep.subr.mxu0 0.0
    %1049 = vmatpush1.xpose.msra.mxu0 0.0
    %1050 = vmatprep.subr.mxu0 0.0
    %1051 = vmatpush1.xpose.msra.mxu0 0.0
    %1052 = vmatprep.subr.mxu0 0.0
    %1053 = vmatpush1.xpose.msra.mxu0 0.0
    %1054 = vmatprep.subr.mxu0 0.0
    %1055 = vmatpush1.xpose.msra.mxu0 0.0
    %1056 = vmatprep.subr.mxu0 0.0
    %1057 = vmatpush1.xpose.msra.mxu0 0.0
    %1058 = vmatprep.subr.mxu0 0.0
    %1059 = vmatpush1.xpose.msra.mxu0 0.0
    %1060 = vmatprep.subr.mxu0 0.0
    %1061 = vmatpush1.xpose.msra.mxu0 0.0
    %1062 = vmatprep.subr.mxu0 0.0
    %1063 = vmatpush1.xpose.msra.mxu0 0.0
    %1064 = vmatprep.subr.mxu0 0.0
    %1065 = vmatpush1.xpose.msra.mxu0 0.0
    %1066 = vmatprep.subr.mxu0 0.0
    %1067 = vmatpush1.xpose.msra.mxu0 0.0
    %1068 = vmatprep.subr.mxu0 0.0
    %1069 = vmatpush1.xpose.msra.mxu0 0.0
    %1070 = vmatprep.subr.mxu0 0.0
    %1071 = vmatpush1.xpose.msra.mxu0 0.0
    %1072 = vmatprep.subr.mxu0 0.0
    %1073 = vmatpush1.xpose.msra.mxu0 0.0
    %1074 = vmatprep.subr.mxu0 0.0
    %1075 = vmatpush1.xpose.msra.mxu0 0.0
    %1076 = vmatprep.subr.mxu0 0.0
    %1077 = vmatpush1.xpose.msra.mxu0 0.0
    %v1078 = vand.u32 %v586, 4294901760
    %1079 = vmatprep.mubr.f32.mxu0 %v1078
    %v1080 = vand.u32 %v583, 4294901760
    %1081 = vmatmul.mubr.f32.gmra.mrb[0].mxu0 %v1080
    %v1082 = vpop.f32.mrb[0].mxu0
    %v1083 = vadd.f32 %v1007, %v1082
    %v1084 = vpop.f32.mrb[0].mxu0
    %1085 = vdwg.mxu0
    %v1086 = vrcp.pop %v1083
    %v1087 = vmul.f32 %v580, %v1086
    %v1088 = vrsqrt.pop %v1087
    %v1089 = vmul.f32 %v1087, %v1088
    %vm1090 = vcmp.eq.f32.partialorder %v1087, inf
    %v1091 = vsel %vm1090, %v1087, %v1089
    %vm1092 = vcmp.eq.f32.partialorder %v1087, 0.0
    %v1093 = vand.u32 %v1087, 2147483648
    %v1094 = vsel %vm1092, %v1093, %v1091
    %v1095 = vadd.f32 %v1094, 0.2
    %v1096 = vxor.u32 %v1095, 2147483648
    %v1097 = vmul.f32 %v1096, 1.442695
    %v1098 = vpow.pop %v1097
    %v1099 = vadd.f32 %v1098, 1.0
    %v1100 = vrcp.pop %v1099
    %v1101 = vmul.f32 1.0, %v1100
    %v1102 = vsub.f32 %v1101, 0.55
    %v1103 = vmul.f32 %v1102, 2.2
    %v1104 = vld [vmem:[%s4] sm:$0xff]
    %vm1105 = vcmask 121856
    %v1107 = vsel %vm1105, %v1104, 0
    %v1110 = vsel %vm1105, %v1103, 0
    %1112 = vmatprep.subr.mxu0 0.0
    %v1113 = vand.u32 %v1110, 4294901760
    %1114 = vmatpush1.xpose.msra.mxu0 %v1113
    %1115 = vmatprep.subr.mxu0 0.0
    %1116 = vmatpush1.xpose.msra.mxu0 0.0
    %1117 = vmatprep.subr.mxu0 0.0
    %1118 = vmatpush1.xpose.msra.mxu0 0.0
    %1119 = vmatprep.subr.mxu0 0.0
    %1120 = vmatpush1.xpose.msra.mxu0 0.0
    %1121 = vmatprep.subr.mxu0 0.0
    %1122 = vmatpush1.xpose.msra.mxu0 0.0
    %1123 = vmatprep.subr.mxu0 0.0
    %1124 = vmatpush1.xpose.msra.mxu0 0.0
    %1125 = vmatprep.subr.mxu0 0.0
    %1126 = vmatpush1.xpose.msra.mxu0 0.0
    %1127 = vmatprep.subr.mxu0 0.0
    %1128 = vmatpush1.xpose.msra.mxu0 0.0
    %1129 = vmatprep.subr.mxu0 0.0
    %1130 = vmatpush1.xpose.msra.mxu0 0.0
    %1131 = vmatprep.subr.mxu0 0.0
    %1132 = vmatpush1.xpose.msra.mxu0 0.0
    %1133 = vmatprep.subr.mxu0 0.0
    %1134 = vmatpush1.xpose.msra.mxu0 0.0
    %1135 = vmatprep.subr.mxu0 0.0
    %1136 = vmatpush1.xpose.msra.mxu0 0.0
    %1137 = vmatprep.subr.mxu0 0.0
    %1138 = vmatpush1.xpose.msra.mxu0 0.0
    %1139 = vmatprep.subr.mxu0 0.0
    %1140 = vmatpush1.xpose.msra.mxu0 0.0
    %1141 = vmatprep.subr.mxu0 0.0
    %1142 = vmatpush1.xpose.msra.mxu0 0.0
    %1143 = vmatprep.subr.mxu0 0.0
    %1144 = vmatpush1.xpose.msra.mxu0 0.0
    %1145 = vmatprep.subr.mxu0 0.0
    %1146 = vmatpush1.xpose.msra.mxu0 0.0
    %1147 = vmatprep.subr.mxu0 0.0
    %1148 = vmatpush1.xpose.msra.mxu0 0.0
    %1149 = vmatprep.subr.mxu0 0.0
    %1150 = vmatpush1.xpose.msra.mxu0 0.0
    %1151 = vmatprep.subr.mxu0 0.0
    %1152 = vmatpush1.xpose.msra.mxu0 0.0
    %1153 = vmatprep.subr.mxu0 0.0
    %1154 = vmatpush1.xpose.msra.mxu0 0.0
    %1155 = vmatprep.subr.mxu0 0.0
    %1156 = vmatpush1.xpose.msra.mxu0 0.0
    %1157 = vmatprep.subr.mxu0 0.0
    %1158 = vmatpush1.xpose.msra.mxu0 0.0
    %1159 = vmatprep.subr.mxu0 0.0
    %1160 = vmatpush1.xpose.msra.mxu0 0.0
    %1161 = vmatprep.subr.mxu0 0.0
    %1162 = vmatpush1.xpose.msra.mxu0 0.0
    %1163 = vmatprep.subr.mxu0 0.0
    %1164 = vmatpush1.xpose.msra.mxu0 0.0
    %1165 = vmatprep.subr.mxu0 0.0
    %1166 = vmatpush1.xpose.msra.mxu0 0.0
    %1167 = vmatprep.subr.mxu0 0.0
    %1168 = vmatpush1.xpose.msra.mxu0 0.0
    %1169 = vmatprep.subr.mxu0 0.0
    %1170 = vmatpush1.xpose.msra.mxu0 0.0
    %1171 = vmatprep.subr.mxu0 0.0
    %1172 = vmatpush1.xpose.msra.mxu0 0.0
    %1173 = vmatprep.subr.mxu0 0.0
    %1174 = vmatpush1.xpose.msra.mxu0 0.0
    %1175 = vmatprep.subr.mxu0 0.0
    %1176 = vmatpush1.xpose.msra.mxu0 0.0
    %1177 = vmatprep.mubr.f32.mxu0 0.0
    %v1178 = vand.u32 %v1107, 4294901760
    %v1179 = vsub.f32 %v1107, %v1178
    %v1180 = vand.u32 %v1179, 4294901760
    %v1181 = vsub.f32 %v1179, %v1180
    %v1182 = vand.u32 %v1181, 4294901760
    %1183 = vmatmul.mubr.f32.gmra.mrb[0].mxu0 %v1182
    %v1184 = vpop.f32.mrb[0].mxu0
    %v1185 = vadd.f32 0.0, %v1184
    %v1186 = vpop.f32.mrb[0].mxu0
    %1187 = vdwg.mxu0
    %1188 = vmatprep.subr.mxu0 0.0
    %v1189 = vand.u32 %v1110, 4294901760
    %v1190 = vsub.f32 %v1110, %v1189
    %v1191 = vand.u32 %v1190, 4294901760
    %v1192 = vsub.f32 %v1190, %v1191
    %v1193 = vand.u32 %v1192, 4294901760
    %1194 = vmatpush1.xpose.msra.mxu0 %v1193
    %1195 = vmatprep.subr.mxu0 0.0
    %1196 = vmatpush1.xpose.msra.mxu0 0.0
    %1197 = vmatprep.subr.mxu0 0.0
    %1198 = vmatpush1.xpose.msra.mxu0 0.0
    %1199 = vmatprep.subr.mxu0 0.0
    %1200 = vmatpush1.xpose.msra.mxu0 0.0
    %1201 = vmatprep.subr.mxu0 0.0
    %1202 = vmatpush1.xpose.msra.mxu0 0.0
    %1203 = vmatprep.subr.mxu0 0.0
    %1204 = vmatpush1.xpose.msra.mxu0 0.0
    %1205 = vmatprep.subr.mxu0 0.0
    %1206 = vmatpush1.xpose.msra.mxu0 0.0
    %1207 = vmatprep.subr.mxu0 0.0
    %1208 = vmatpush1.xpose.msra.mxu0 0.0
    %1209 = vmatprep.subr.mxu0 0.0
    %1210 = vmatpush1.xpose.msra.mxu0 0.0
    %1211 = vmatprep.subr.mxu0 0.0
    %1212 = vmatpush1.xpose.msra.mxu0 0.0
    %1213 = vmatprep.subr.mxu0 0.0
    %1214 = vmatpush1.xpose.msra.mxu0 0.0
    %1215 = vmatprep.subr.mxu0 0.0
    %1216 = vmatpush1.xpose.msra.mxu0 0.0
    %1217 = vmatprep.subr.mxu0 0.0
    %1218 = vmatpush1.xpose.msra.mxu0 0.0
    %1219 = vmatprep.subr.mxu0 0.0
    %1220 = vmatpush1.xpose.msra.mxu0 0.0
    %1221 = vmatprep.subr.mxu0 0.0
    %1222 = vmatpush1.xpose.msra.mxu0 0.0
    %1223 = vmatprep.subr.mxu0 0.0
    %1224 = vmatpush1.xpose.msra.mxu0 0.0
    %1225 = vmatprep.subr.mxu0 0.0
    %1226 = vmatpush1.xpose.msra.mxu0 0.0
    %1227 = vmatprep.subr.mxu0 0.0
    %1228 = vmatpush1.xpose.msra.mxu0 0.0
    %1229 = vmatprep.subr.mxu0 0.0
    %1230 = vmatpush1.xpose.msra.mxu0 0.0
    %1231 = vmatprep.subr.mxu0 0.0
    %1232 = vmatpush1.xpose.msra.mxu0 0.0
    %1233 = vmatprep.subr.mxu0 0.0
    %1234 = vmatpush1.xpose.msra.mxu0 0.0
    %1235 = vmatprep.subr.mxu0 0.0
    %1236 = vmatpush1.xpose.msra.mxu0 0.0
    %1237 = vmatprep.subr.mxu0 0.0
    %1238 = vmatpush1.xpose.msra.mxu0 0.0
    %1239 = vmatprep.subr.mxu0 0.0
    %1240 = vmatpush1.xpose.msra.mxu0 0.0
    %1241 = vmatprep.subr.mxu0 0.0
    %1242 = vmatpush1.xpose.msra.mxu0 0.0
    %1243 = vmatprep.subr.mxu0 0.0
    %1244 = vmatpush1.xpose.msra.mxu0 0.0
    %1245 = vmatprep.subr.mxu0 0.0
    %1246 = vmatpush1.xpose.msra.mxu0 0.0
    %1247 = vmatprep.subr.mxu0 0.0
    %1248 = vmatpush1.xpose.msra.mxu0 0.0
    %1249 = vmatprep.subr.mxu0 0.0
    %1250 = vmatpush1.xpose.msra.mxu0 0.0
    %1251 = vmatprep.subr.mxu0 0.0
    %1252 = vmatpush1.xpose.msra.mxu0 0.0
    %1253 = vmatprep.subr.mxu0 0.0
    %1254 = vmatpush1.xpose.msra.mxu0 0.0
    %1255 = vmatprep.subr.mxu0 0.0
    %1256 = vmatpush1.xpose.msra.mxu0 0.0
    %1257 = vmatprep.mubr.f32.mxu0 0.0
    %v1258 = vand.u32 %v1107, 4294901760
    %1259 = vmatmul.mubr.f32.gmra.mrb[0].mxu0 %v1258
    %v1260 = vpop.f32.mrb[0].mxu0
    %v1261 = vadd.f32 %v1185, %v1260
    %v1262 = vpop.f32.mrb[0].mxu0
    %1263 = vdwg.mxu0
    %1264 = vmatprep.subr.mxu0 0.0
    %v1265 = vand.u32 %v1110, 4294901760
    %v1266 = vsub.f32 %v1110, %v1265
    %1267 = vmatpush1.xpose.msra.mxu0 %v1266
    %1268 = vmatprep.subr.mxu0 0.0
    %1269 = vmatpush1.xpose.msra.mxu0 0.0
    %1270 = vmatprep.subr.mxu0 0.0
    %1271 = vmatpush1.xpose.msra.mxu0 0.0
    %1272 = vmatprep.subr.mxu0 0.0
    %1273 = vmatpush1.xpose.msra.mxu0 0.0
    %1274 = vmatprep.subr.mxu0 0.0
    %1275 = vmatpush1.xpose.msra.mxu0 0.0
    %1276 = vmatprep.subr.mxu0 0.0
    %1277 = vmatpush1.xpose.msra.mxu0 0.0
    %1278 = vmatprep.subr.mxu0 0.0
    %1279 = vmatpush1.xpose.msra.mxu0 0.0
    %1280 = vmatprep.subr.mxu0 0.0
    %1281 = vmatpush1.xpose.msra.mxu0 0.0
    %1282 = vmatprep.subr.mxu0 0.0
    %1283 = vmatpush1.xpose.msra.mxu0 0.0
    %1284 = vmatprep.subr.mxu0 0.0
    %1285 = vmatpush1.xpose.msra.mxu0 0.0
    %1286 = vmatprep.subr.mxu0 0.0
    %1287 = vmatpush1.xpose.msra.mxu0 0.0
    %1288 = vmatprep.subr.mxu0 0.0
    %1289 = vmatpush1.xpose.msra.mxu0 0.0
    %1290 = vmatprep.subr.mxu0 0.0
    %1291 = vmatpush1.xpose.msra.mxu0 0.0
    %1292 = vmatprep.subr.mxu0 0.0
    %1293 = vmatpush1.xpose.msra.mxu0 0.0
    %1294 = vmatprep.subr.mxu0 0.0
    %1295 = vmatpush1.xpose.msra.mxu0 0.0
    %1296 = vmatprep.subr.mxu0 0.0
    %1297 = vmatpush1.xpose.msra.mxu0 0.0
    %1298 = vmatprep.subr.mxu0 0.0
    %1299 = vmatpush1.xpose.msra.mxu0 0.0
    %1300 = vmatprep.subr.mxu0 0.0
    %1301 = vmatpush1.xpose.msra.mxu0 0.0
    %1302 = vmatprep.subr.mxu0 0.0
    %1303 = vmatpush1.xpose.msra.mxu0 0.0
    %1304 = vmatprep.subr.mxu0 0.0
    %1305 = vmatpush1.xpose.msra.mxu0 0.0
    %1306 = vmatprep.subr.mxu0 0.0
    %1307 = vmatpush1.xpose.msra.mxu0 0.0
    %1308 = vmatprep.subr.mxu0 0.0
    %1309 = vmatpush1.xpose.msra.mxu0 0.0
    %1310 = vmatprep.subr.mxu0 0.0
    %1311 = vmatpush1.xpose.msra.mxu0 0.0
    %1312 = vmatprep.subr.mxu0 0.0
    %1313 = vmatpush1.xpose.msra.mxu0 0.0
    %1314 = vmatprep.subr.mxu0 0.0
    %1315 = vmatpush1.xpose.msra.mxu0 0.0
    %1316 = vmatprep.subr.mxu0 0.0
    %1317 = vmatpush1.xpose.msra.mxu0 0.0
    %1318 = vmatprep.subr.mxu0 0.0
    %1319 = vmatpush1.xpose.msra.mxu0 0.0
    %1320 = vmatprep.subr.mxu0 0.0
    %1321 = vmatpush1.xpose.msra.mxu0 0.0
    %1322 = vmatprep.subr.mxu0 0.0
    %1323 = vmatpush1.xpose.msra.mxu0 0.0
    %1324 = vmatprep.subr.mxu0 0.0
    %1325 = vmatpush1.xpose.msra.mxu0 0.0
    %1326 = vmatprep.subr.mxu0 0.0
    %1327 = vmatpush1.xpose.msra.mxu0 0.0
    %1328 = vmatprep.subr.mxu0 0.0
    %1329 = vmatpush1.xpose.msra.mxu0 0.0
    %1330 = vmatprep.mubr.f32.mxu0 0.0
    %v1331 = vand.u32 %v1107, 4294901760
    %v1332 = vsub.f32 %v1107, %v1331
    %1333 = vmatmul.mubr.f32.gmra.mrb[0].mxu0 %v1332
    %v1334 = vpop.f32.mrb[0].mxu0
    %v1335 = vadd.f32 %v1261, %v1334
    %v1336 = vpop.f32.mrb[0].mxu0
    %1337 = vdwg.mxu0
    %1338 = vmatprep.subr.mxu0 0.0
    %v1339 = vand.u32 %v1110, 4294901760
    %1340 = vmatpush1.xpose.msra.mxu0 %v1339
    %1341 = vmatprep.subr.mxu0 0.0
    %1342 = vmatpush1.xpose.msra.mxu0 0.0
    %1343 = vmatprep.subr.mxu0 0.0
    %1344 = vmatpush1.xpose.msra.mxu0 0.0
    %1345 = vmatprep.subr.mxu0 0.0
    %1346 = vmatpush1.xpose.msra.mxu0 0.0
    %1347 = vmatprep.subr.mxu0 0.0
    %1348 = vmatpush1.xpose.msra.mxu0 0.0
    %1349 = vmatprep.subr.mxu0 0.0
    %1350 = vmatpush1.xpose.msra.mxu0 0.0
    %1351 = vmatprep.subr.mxu0 0.0
    %1352 = vmatpush1.xpose.msra.mxu0 0.0
    %1353 = vmatprep.subr.mxu0 0.0
    %1354 = vmatpush1.xpose.msra.mxu0 0.0
    %1355 = vmatprep.subr.mxu0 0.0
    %1356 = vmatpush1.xpose.msra.mxu0 0.0
    %1357 = vmatprep.subr.mxu0 0.0
    %1358 = vmatpush1.xpose.msra.mxu0 0.0
    %1359 = vmatprep.subr.mxu0 0.0
    %1360 = vmatpush1.xpose.msra.mxu0 0.0
    %1361 = vmatprep.subr.mxu0 0.0
    %1362 = vmatpush1.xpose.msra.mxu0 0.0
    %1363 = vmatprep.subr.mxu0 0.0
    %1364 = vmatpush1.xpose.msra.mxu0 0.0
    %1365 = vmatprep.subr.mxu0 0.0
    %1366 = vmatpush1.xpose.msra.mxu0 0.0
    %1367 = vmatprep.subr.mxu0 0.0
    %1368 = vmatpush1.xpose.msra.mxu0 0.0
    %1369 = vmatprep.subr.mxu0 0.0
    %1370 = vmatpush1.xpose.msra.mxu0 0.0
    %1371 = vmatprep.subr.mxu0 0.0
    %1372 = vmatpush1.xpose.msra.mxu0 0.0
    %1373 = vmatprep.subr.mxu0 0.0
    %1374 = vmatpush1.xpose.msra.mxu0 0.0
    %1375 = vmatprep.subr.mxu0 0.0
    %1376 = vmatpush1.xpose.msra.mxu0 0.0
    %1377 = vmatprep.subr.mxu0 0.0
    %1378 = vmatpush1.xpose.msra.mxu0 0.0
    %1379 = vmatprep.subr.mxu0 0.0
    %1380 = vmatpush1.xpose.msra.mxu0 0.0
    %1381 = vmatprep.subr.mxu0 0.0
    %1382 = vmatpush1.xpose.msra.mxu0 0.0
    %1383 = vmatprep.subr.mxu0 0.0
    %1384 = vmatpush1.xpose.msra.mxu0 0.0
    %1385 = vmatprep.subr.mxu0 0.0
    %1386 = vmatpush1.xpose.msra.mxu0 0.0
    %1387 = vmatprep.subr.mxu0 0.0
    %1388 = vmatpush1.xpose.msra.mxu0 0.0
    %1389 = vmatprep.subr.mxu0 0.0
    %1390 = vmatpush1.xpose.msra.mxu0 0.0
    %1391 = vmatprep.subr.mxu0 0.0
    %1392 = vmatpush1.xpose.msra.mxu0 0.0
    %1393 = vmatprep.subr.mxu0 0.0
    %1394 = vmatpush1.xpose.msra.mxu0 0.0
    %1395 = vmatprep.subr.mxu0 0.0
    %1396 = vmatpush1.xpose.msra.mxu0 0.0
    %1397 = vmatprep.subr.mxu0 0.0
    %1398 = vmatpush1.xpose.msra.mxu0 0.0
    %1399 = vmatprep.subr.mxu0 0.0
    %1400 = vmatpush1.xpose.msra.mxu0 0.0
    %1401 = vmatprep.subr.mxu0 0.0
    %1402 = vmatpush1.xpose.msra.mxu0 0.0
    %1403 = vmatprep.mubr.f32.mxu0 0.0
    %v1404 = vand.u32 %v1107, 4294901760
    %v1405 = vsub.f32 %v1107, %v1404
    %v1406 = vand.u32 %v1405, 4294901760
    %1407 = vmatmul.mubr.f32.gmra.mrb[0].mxu0 %v1406
    %v1408 = vpop.f32.mrb[0].mxu0
    %v1409 = vadd.f32 %v1335, %v1408
    %v1410 = vpop.f32.mrb[0].mxu0
    %1411 = vdwg.mxu0
    %1412 = vmatprep.subr.mxu0 0.0
    %v1413 = vand.u32 %v1110, 4294901760
    %v1414 = vsub.f32 %v1110, %v1413
    %v1415 = vand.u32 %v1414, 4294901760
    %1416 = vmatpush1.xpose.msra.mxu0 %v1415
    %1417 = vmatprep.subr.mxu0 0.0
    %1418 = vmatpush1.xpose.msra.mxu0 0.0
    %1419 = vmatprep.subr.mxu0 0.0
    %1420 = vmatpush1.xpose.msra.mxu0 0.0
    %1421 = vmatprep.subr.mxu0 0.0
    %1422 = vmatpush1.xpose.msra.mxu0 0.0
    %1423 = vmatprep.subr.mxu0 0.0
    %1424 = vmatpush1.xpose.msra.mxu0 0.0
    %1425 = vmatprep.subr.mxu0 0.0
    %1426 = vmatpush1.xpose.msra.mxu0 0.0
    %1427 = vmatprep.subr.mxu0 0.0
    %1428 = vmatpush1.xpose.msra.mxu0 0.0
    %1429 = vmatprep.subr.mxu0 0.0
    %1430 = vmatpush1.xpose.msra.mxu0 0.0
    %1431 = vmatprep.subr.mxu0 0.0
    %1432 = vmatpush1.xpose.msra.mxu0 0.0
    %1433 = vmatprep.subr.mxu0 0.0
    %1434 = vmatpush1.xpose.msra.mxu0 0.0
    %1435 = vmatprep.subr.mxu0 0.0
    %1436 = vmatpush1.xpose.msra.mxu0 0.0
    %1437 = vmatprep.subr.mxu0 0.0
    %1438 = vmatpush1.xpose.msra.mxu0 0.0
    %1439 = vmatprep.subr.mxu0 0.0
    %1440 = vmatpush1.xpose.msra.mxu0 0.0
    %1441 = vmatprep.subr.mxu0 0.0
    %1442 = vmatpush1.xpose.msra.mxu0 0.0
    %1443 = vmatprep.subr.mxu0 0.0
    %1444 = vmatpush1.xpose.msra.mxu0 0.0
    %1445 = vmatprep.subr.mxu0 0.0
    %1446 = vmatpush1.xpose.msra.mxu0 0.0
    %1447 = vmatprep.subr.mxu0 0.0
    %1448 = vmatpush1.xpose.msra.mxu0 0.0
    %1449 = vmatprep.subr.mxu0 0.0
    %1450 = vmatpush1.xpose.msra.mxu0 0.0
    %1451 = vmatprep.subr.mxu0 0.0
    %1452 = vmatpush1.xpose.msra.mxu0 0.0
    %1453 = vmatprep.subr.mxu0 0.0
    %1454 = vmatpush1.xpose.msra.mxu0 0.0
    %1455 = vmatprep.subr.mxu0 0.0
    %1456 = vmatpush1.xpose.msra.mxu0 0.0
    %1457 = vmatprep.subr.mxu0 0.0
    %1458 = vmatpush1.xpose.msra.mxu0 0.0
    %1459 = vmatprep.subr.mxu0 0.0
    %1460 = vmatpush1.xpose.msra.mxu0 0.0
    %1461 = vmatprep.subr.mxu0 0.0
    %1462 = vmatpush1.xpose.msra.mxu0 0.0
    %1463 = vmatprep.subr.mxu0 0.0
    %1464 = vmatpush1.xpose.msra.mxu0 0.0
    %1465 = vmatprep.subr.mxu0 0.0
    %1466 = vmatpush1.xpose.msra.mxu0 0.0
    %1467 = vmatprep.subr.mxu0 0.0
    %1468 = vmatpush1.xpose.msra.mxu0 0.0
    %1469 = vmatprep.subr.mxu0 0.0
    %1470 = vmatpush1.xpose.msra.mxu0 0.0
    %1471 = vmatprep.subr.mxu0 0.0
    %1472 = vmatpush1.xpose.msra.mxu0 0.0
    %1473 = vmatprep.subr.mxu0 0.0
    %1474 = vmatpush1.xpose.msra.mxu0 0.0
    %1475 = vmatprep.subr.mxu0 0.0
    %1476 = vmatpush1.xpose.msra.mxu0 0.0
    %1477 = vmatprep.subr.mxu0 0.0
    %1478 = vmatpush1.xpose.msra.mxu0 0.0
    %1479 = vmatprep.mubr.f32.mxu0 0.0
    %v1480 = vand.u32 %v1107, 4294901760
    %1481 = vmatmul.mubr.f32.gmra.mrb[0].mxu0 %v1480
    %v1482 = vpop.f32.mrb[0].mxu0
    %v1483 = vadd.f32 %v1409, %v1482
    %v1484 = vpop.f32.mrb[0].mxu0
    %1485 = vdwg.mxu0
    %1486 = vmatprep.subr.mxu0 0.0
    %v1487 = vand.u32 %v1110, 4294901760
    %1488 = vmatpush1.xpose.msra.mxu0 %v1487
    %1489 = vmatprep.subr.mxu0 0.0
    %1490 = vmatpush1.xpose.msra.mxu0 0.0
    %1491 = vmatprep.subr.mxu0 0.0
    %1492 = vmatpush1.xpose.msra.mxu0 0.0
    %1493 = vmatprep.subr.mxu0 0.0
    %1494 = vmatpush1.xpose.msra.mxu0 0.0
    %1495 = vmatprep.subr.mxu0 0.0
    %1496 = vmatpush1.xpose.msra.mxu0 0.0
    %1497 = vmatprep.subr.mxu0 0.0
    %1498 = vmatpush1.xpose.msra.mxu0 0.0
    %1499 = vmatprep.subr.mxu0 0.0
    %1500 = vmatpush1.xpose.msra.mxu0 0.0
    %1501 = vmatprep.subr.mxu0 0.0
    %1502 = vmatpush1.xpose.msra.mxu0 0.0
    %1503 = vmatprep.subr.mxu0 0.0
    %1504 = vmatpush1.xpose.msra.mxu0 0.0
    %1505 = vmatprep.subr.mxu0 0.0
    %1506 = vmatpush1.xpose.msra.mxu0 0.0
    %1507 = vmatprep.subr.mxu0 0.0
    %1508 = vmatpush1.xpose.msra.mxu0 0.0
    %1509 = vmatprep.subr.mxu0 0.0
    %1510 = vmatpush1.xpose.msra.mxu0 0.0
    %1511 = vmatprep.subr.mxu0 0.0
    %1512 = vmatpush1.xpose.msra.mxu0 0.0
    %1513 = vmatprep.subr.mxu0 0.0
    %1514 = vmatpush1.xpose.msra.mxu0 0.0
    %1515 = vmatprep.subr.mxu0 0.0
    %1516 = vmatpush1.xpose.msra.mxu0 0.0
    %1517 = vmatprep.subr.mxu0 0.0
    %1518 = vmatpush1.xpose.msra.mxu0 0.0
    %1519 = vmatprep.subr.mxu0 0.0
    %1520 = vmatpush1.xpose.msra.mxu0 0.0
    %1521 = vmatprep.subr.mxu0 0.0
    %1522 = vmatpush1.xpose.msra.mxu0 0.0
    %1523 = vmatprep.subr.mxu0 0.0
    %1524 = vmatpush1.xpose.msra.mxu0 0.0
    %1525 = vmatprep.subr.mxu0 0.0
    %1526 = vmatpush1.xpose.msra.mxu0 0.0
    %1527 = vmatprep.subr.mxu0 0.0
    %1528 = vmatpush1.xpose.msra.mxu0 0.0
    %1529 = vmatprep.subr.mxu0 0.0
    %1530 = vmatpush1.xpose.msra.mxu0 0.0
    %1531 = vmatprep.subr.mxu0 0.0
    %1532 = vmatpush1.xpose.msra.mxu0 0.0
    %1533 = vmatprep.subr.mxu0 0.0
    %1534 = vmatpush1.xpose.msra.mxu0 0.0
    %1535 = vmatprep.subr.mxu0 0.0
    %1536 = vmatpush1.xpose.msra.mxu0 0.0
    %1537 = vmatprep.subr.mxu0 0.0
    %1538 = vmatpush1.xpose.msra.mxu0 0.0
    %1539 = vmatprep.subr.mxu0 0.0
    %1540 = vmatpush1.xpose.msra.mxu0 0.0
    %1541 = vmatprep.subr.mxu0 0.0
    %1542 = vmatpush1.xpose.msra.mxu0 0.0
    %1543 = vmatprep.subr.mxu0 0.0
    %1544 = vmatpush1.xpose.msra.mxu0 0.0
    %1545 = vmatprep.subr.mxu0 0.0
    %1546 = vmatpush1.xpose.msra.mxu0 0.0
    %1547 = vmatprep.subr.mxu0 0.0
    %1548 = vmatpush1.xpose.msra.mxu0 0.0
    %1549 = vmatprep.subr.mxu0 0.0
    %1550 = vmatpush1.xpose.msra.mxu0 0.0
    %1551 = vmatprep.mubr.f32.mxu0 0.0
    %v1552 = vand.u32 %v1107, 4294901760
    %1553 = vmatmul.mubr.f32.gmra.mrb[0].mxu0 %v1552
    %v1554 = vpop.f32.mrb[0].mxu0
    %v1555 = vadd.f32 %v1483, %v1554
    %v1556 = vpop.f32.mrb[0].mxu0
    %1557 = vdwg.mxu0
    %s1558 = sld [smem:[#allocation2]]
    %v1559 = vstv %s1558
    %v1560 = vadd.f32 %v1555, %v1559
    %vm1561 = vcmask 24576
    %1562 = vst.msk [vmem:[#allocation9] sm:$0x1] %vm1561, %v1560
    // Predicated region
    $region38: #{tpu_custom_call.1} parent=1 // pred_check
      _
    $region39: #{tpu_custom_call.1} parent=1 // pred_check_branch
      %1564 = sbr.rel (0) target = $region41
    $region40: #{tpu_custom_call.1} parent=1 // pred_region
      %s1566 = ssub.s32 16, 16
      %1567 = vsyncadd [#allocation5], %s1566
      %s1569 = sshll.u32 [#allocation9], 4
      %s1570 = int_to_ptr.vmem [resolvable:$true] %s1569
      %1572 = dma.vmem_to_hbm [thread:$0]  %s1570, 16, %s6, [#allocation5]
    $region41: #{tpu_custom_call.1} parent=1 // pred_fallthru
      _
    // Predicated region
    $region42: #{tpu_custom_call.1} parent=1 // pred_check
      _
    $region43: #{tpu_custom_call.1} parent=1 // pred_check_branch
      %1574 = sbr.rel (0) target = $region45
    $region44: #{tpu_custom_call.1} parent=1 // pred_region
      %1575 = dma.done [#allocation5], 16
    $region45: #{tpu_custom_call.1} parent=1 // pred_fallthru
      _
    %1576 = vsyncpa [#allocation4], 1
    %1577 = vsyncpa [#allocation7], 1
    %1578 = vsyncpa [#allocation5], 1

</llo_original>
